<compile_context>
chip_gen: v7x
topology: tpu7x:2x2x1
jax: 0.10.0
libtpu: 0.0.40
codegen_flags: <defaults>
</compile_context>

<pallas_src>
import functools
import math

import jax
import jax.numpy as jnp
import numpy as np
from jax.experimental import pallas as pl
from jax.experimental.pallas import tpu as pltpu


# ----------------------------- fused MHA kernel -----------------------------

def _mha_fused_kernel(xq_ref, xk_ref, xv_ref,
                      wq_ref, wk_ref, wv_ref, wo_ref,
                      bq_ref, bk_ref, bv_ref, bo_ref,
                      mask_ref,
                      o_ref, attw_ref,
                      *, n_heads, block_b, s_q, s_k):
    H = n_heads
    D = xq_ref.shape[-1]
    Dh = D // H

    # Full-width (D, D) projections for every row in the block (all batches / heads at
    # once): one MXU matmul each, bf16 feed, f32 accumulate.  1/scale is already folded
    # into Wq/bq by the wrapper.
    q = jnp.dot(xq_ref[...], wq_ref[...], preferred_element_type=jnp.float32) + bq_ref[...]
    k = jnp.dot(xk_ref[...], wk_ref[...], preferred_element_type=jnp.float32) + bk_ref[...]
    v = jnp.dot(xv_ref[...], wv_ref[...], preferred_element_type=jnp.float32) + bv_ref[...]

    qb = q.astype(jnp.bfloat16)
    kb = k.astype(jnp.bfloat16)
    vb = v.astype(jnp.bfloat16)
    wo = wo_ref[...]                                    # (D, D) bf16
    bo = bo_ref[...]                                    # (1, D) f32

    for b in range(block_b):                            # static unroll; block_b is tiny
        # Mask shared across heads; True/nonzero => score = -1e10 (matches masked_fill).
        masked = mask_ref[b, :, :] > 0                  # (Sq, Sk) bool
        q_b = qb[b * s_q:(b + 1) * s_q, :]              # (Sq, D)
        k_b = kb[b * s_k:(b + 1) * s_k, :]              # (Sk, D)
        v_b = vb[b * s_k:(b + 1) * s_k, :]              # (Sk, D)
        o_b = jnp.zeros((s_q, D), jnp.float32)

        for h in range(H):                              # static unroll over heads
            hs = slice(h * Dh, (h + 1) * Dh)
            # scores = (Q/scale) @ K^T, contracting Dh (no explicit transpose op).
            s = jax.lax.dot_general(q_b[:, hs], k_b[:, hs],
                                    (((1,), (1,)), ((), ())),
                                    preferred_element_type=jnp.float32)   # (Sq, Sk)
            s = jnp.where(masked, jnp.float32(-1e10), s)
            # Softmax in f32 (v5e has no bf16 VPU/EUP).  Fully-masked rows yield uniform
            # weights (exp(0)/Sk), matching PyTorch masked_fill + softmax.
            s = s - jnp.max(s, axis=-1, keepdims=True)
            p = jnp.exp(s)
            w = p * pl.reciprocal(jnp.sum(p, axis=-1, keepdims=True), approx=True)
            attw_ref[b, h, :, :] = w                    # attention-weights output (f32)

            a = jnp.dot(w.astype(jnp.bfloat16), v_b[:, hs],
                        preferred_element_type=jnp.float32)               # (Sq, Dh)
            # Fused output projection: concat-heads @ Wo == sum_h a_h @ Wo[h-rows];
            # accumulate directly into the (Sq, D) result.
            o_b = o_b + jnp.dot(a.astype(jnp.bfloat16), wo[hs, :],
                                preferred_element_type=jnp.float32)

        o_ref[b * s_q:(b + 1) * s_q, :] = o_b + bo


# ----------------------------- wrapper -----------------------------

def _single_tensorcore(kind: str) -> bool:
    # v7x has 2 TensorCores per chip; v5e/v6e (and anything unknown) are treated as 1.
    k = kind.lower()
    return not ("v7" in k or "7x" in k)


@functools.partial(jax.jit, static_argnames=("n_heads", "block_b"))
def mha_forward(params, q_in, k_in, v_in, mask, n_heads, block_b=None):
    """Fused Pallas MHA.forward.

    q_in/k_in/v_in: (B, S, D) float32.  mask: (B, Sq, Sk) bool/int (True = masked out),
    shared across heads, or None.
    Returns (x, attention_weights): (B, Sq, D) f32, (B, H, Sq, Sk) f32.
    """
    B, Sq, D = q_in.shape
    Sk = k_in.shape[1]
    H = n_heads
    assert D % H == 0
    scale_inv = float(1.0 / math.sqrt(D / H))            # scale = sqrt(d_model / n_heads)

    if block_b is None:
        try:
            kind = jax.devices()[0].device_kind
        except Exception:  # pragma: no cover
            kind = ""
        # Single-TC chips: merge the whole batch into one grid step (no per-step
        # overhead, full 16-row bf16 sublane tiles).  v7x: keep the parallel batch grid.
        block_b = B if _single_tensorcore(kind) else 1
    assert B % block_b == 0

    bf16 = lambda a: a.astype(jnp.bfloat16)
    # Fold 1/scale into the Q projection weights/bias (one-time, weight-sized).
    wq = bf16(params["wq"] * scale_inv)
    wk = bf16(params["wk"])
    wv = bf16(params["wv"])
    wo = bf16(params["wo"])
    bq = (params["bq"] * scale_inv).reshape(1, D).astype(jnp.float32)
    bk = params["bk"].reshape(1, D).astype(jnp.float32)
    bv = params["bv"].reshape(1, D).astype(jnp.float32)
    bo = params["bo"].reshape(1, D).astype(jnp.float32)

    # TODO(synk): pass the mask as int8 (or generate causal/padding masks in-kernel) to cut
    #             the O(B*S^2) mask DMA bytes at scale; int32 kept here for lowering safety.
    if mask is None:
        mask_i = jnp.zeros((B, Sq, Sk), jnp.int32)
    else:
        mask_i = jnp.broadcast_to(mask, (B, Sq, Sk)).astype(jnp.int32)

    # Fold B into the row dimension outside the kernel (free reshape): the kernel only
    # sees lane-major 2-D activations and never reshapes across sublanes/lanes.
    xq = bf16(q_in).reshape(B * Sq, D)
    xk = bf16(k_in).reshape(B * Sk, D)
    xv = bf16(v_in).reshape(B * Sk, D)

    kernel = functools.partial(_mha_fused_kernel, n_heads=H,
                               block_b=block_b, s_q=Sq, s_k=Sk)
    grid = (B // block_b,)
    w_spec = pl.BlockSpec((D, D), lambda b: (0, 0))
    b_spec = pl.BlockSpec((1, D), lambda b: (0, 0))

    out2, attw = pl.pallas_call(
        kernel,
        grid=grid,
        out_shape=(
            jax.ShapeDtypeStruct((B * Sq, D), jnp.float32),
            jax.ShapeDtypeStruct((B, H, Sq, Sk), jnp.float32),
        ),
        in_specs=[
            pl.BlockSpec((block_b * Sq, D), lambda b: (b, 0)),       # x_q rows
            pl.BlockSpec((block_b * Sk, D), lambda b: (b, 0)),       # x_k rows
            pl.BlockSpec((block_b * Sk, D), lambda b: (b, 0)),       # x_v rows
            w_spec, w_spec, w_spec, w_spec,                          # Wq Wk Wv Wo (D, D)
            b_spec, b_spec, b_spec, b_spec,                          # bq bk bv bo (1, D)
            pl.BlockSpec((block_b, Sq, Sk), lambda b: (b, 0, 0)),    # mask
        ],
        out_specs=(
            pl.BlockSpec((block_b * Sq, D), lambda b: (b, 0)),           # x rows
            pl.BlockSpec((block_b, H, Sq, Sk), lambda b: (b, 0, 0, 0)),  # attention weights
        ),
        compiler_params=pltpu.CompilerParams(
            dimension_semantics=("parallel",)),
    )(xq, xk, xv, wq, wk, wv, wo, bq, bk, bv, bo, mask_i)

    return out2.reshape(B, Sq, D), attw


# ----------------------------- reference & init -----------------------------

def mha_reference(params, q_in, k_in, v_in, mask, n_heads):
    """Pure-JAX f32 reference mirroring the PyTorch MHA.forward."""
    B, Sq, D = q_in.shape
    H, Dh = n_heads, D // n_heads
    q = q_in @ params["wq"] + params["bq"]
    k = k_in @ params["wk"] + params["bk"]
    v = v_in @ params["wv"] + params["bv"]
    split = lambda x: x.reshape(x.shape[0], x.shape[1], H, Dh).transpose(0, 2, 1, 3)
    q, k, v = split(q), split(k), split(v)
    s = (q @ jnp.swapaxes(k, -1, -2)) / jnp.sqrt(jnp.float32(D / H))
    if mask is not None:
        s = jnp.where(mask[:, None, :, :], jnp.float32(-1e10), s)
    w = jax.nn.softmax(s, axis=-1)
    a = (w @ v).transpose(0, 2, 1, 3).reshape(B, Sq, D)
    return a @ params["wo"] + params["bo"], w


def init_mha_params(key, d_model):
    def xavier(k, shape):
        bound = math.sqrt(6.0 / (shape[0] + shape[1]))
        return jax.random.uniform(k, shape, jnp.float32, -bound, bound)
    ks = jax.random.split(key, 8)
    d = d_model
    u = lambda k: jax.random.uniform(k, (d,), jnp.float32, -0.1, 0.1)
    return {"wq": xavier(ks[0], (d, d)), "bq": u(ks[1]),
            "wk": xavier(ks[2], (d, d)), "bk": u(ks[3]),
            "wv": xavier(ks[4], (d, d)), "bv": u(ks[5]),
            "wo": xavier(ks[6], (d, d)), "bo": u(ks[7])}


# ----------------------------- main -----------------------------

if __name__ == "__main__":
    d_model, n_heads = 32, 4
    B, S = 2, 8

    key = jax.random.PRNGKey(0)
    kp, kx = jax.random.split(key)
    params = init_mha_params(kp, d_model)
    x = jax.random.normal(kx, (B, S, d_model), jnp.float32)

    # Causal + key-padding mask (last two key positions padded), shared across heads.
    causal = jnp.triu(jnp.ones((S, S), jnp.bool_), k=1)[None]          # (1, S, S)
    pad = jnp.zeros((B, S), jnp.bool_).at[:, -2:].set(True)            # (B, S)
    mask = causal | pad[:, None, :]                                    # (B, S, S)

    out, attw = mha_forward(params, x, x, x, mask, n_heads=n_heads)
    jax.block_until_ready((out, attw))

    out_ref, attw_ref = mha_reference(params, x, x, x, mask, n_heads)

    assert out.shape == (B, S, d_model)
    assert attw.shape == (B, n_heads, S, S)
    # bf16 MXU feed + approx EUP reciprocal => loose tolerances vs. the f32 reference.
    np.testing.assert_allclose(np.asarray(out), np.asarray(out_ref), atol=1.5e-1, rtol=1e-1)
    np.testing.assert_allclose(np.asarray(attw), np.asarray(attw_ref), atol=8e-2, rtol=0)
    print("KERNEL_OK")
</pallas_src>

<mosaic_0001>
module attributes {stable_mosaic.version = 11 : i64} {
  func.func @_mha_fused_kernel(%arg0: i32, %arg1: memref<16x32xbf16, #tpu.memory_space<vmem>>, %arg2: memref<16x32xbf16, #tpu.memory_space<vmem>>, %arg3: memref<16x32xbf16, #tpu.memory_space<vmem>>, %arg4: memref<32x32xbf16, #tpu.memory_space<vmem>>, %arg5: memref<32x32xbf16, #tpu.memory_space<vmem>>, %arg6: memref<32x32xbf16, #tpu.memory_space<vmem>>, %arg7: memref<32x32xbf16, #tpu.memory_space<vmem>>, %arg8: memref<1x32xf32, #tpu.memory_space<vmem>>, %arg9: memref<1x32xf32, #tpu.memory_space<vmem>>, %arg10: memref<1x32xf32, #tpu.memory_space<vmem>>, %arg11: memref<1x32xf32, #tpu.memory_space<vmem>>, %arg12: memref<2x8x8xi32, #tpu.memory_space<vmem>>, %arg13: memref<16x32xf32, #tpu.memory_space<vmem>>, %arg14: memref<2x4x8x8xf32, #tpu.memory_space<vmem>>) attributes {dimension_semantics = [#tpu.dimension_semantics<parallel>], iteration_bounds = array<i64: 1>, scalar_prefetch = 0 : i64, scratch_operands = 0 : i64, tpu.core_type = #tpu.core_type<tc>, window_params = [{transform_indices = @transform_0, window_bounds = array<i64: 16, 32>}, {transform_indices = @transform_1, window_bounds = array<i64: 16, 32>}, {transform_indices = @transform_2, window_bounds = array<i64: 16, 32>}, {pipeline_mode = #tpu.pipeline_mode<synchronous>, transform_indices = @transform_3, window_bounds = array<i64: 32, 32>}, {pipeline_mode = #tpu.pipeline_mode<synchronous>, transform_indices = @transform_4, window_bounds = array<i64: 32, 32>}, {pipeline_mode = #tpu.pipeline_mode<synchronous>, transform_indices = @transform_5, window_bounds = array<i64: 32, 32>}, {pipeline_mode = #tpu.pipeline_mode<synchronous>, transform_indices = @transform_6, window_bounds = array<i64: 32, 32>}, {pipeline_mode = #tpu.pipeline_mode<synchronous>, transform_indices = @transform_7, window_bounds = array<i64: 1, 32>}, {pipeline_mode = #tpu.pipeline_mode<synchronous>, transform_indices = @transform_8, window_bounds = array<i64: 1, 32>}, {pipeline_mode = #tpu.pipeline_mode<synchronous>, transform_indices = @transform_9, window_bounds = array<i64: 1, 32>}, {pipeline_mode = #tpu.pipeline_mode<synchronous>, transform_indices = @transform_10, window_bounds = array<i64: 1, 32>}, {transform_indices = @transform_11, window_bounds = array<i64: 2, 8, 8>}, {transform_indices = @transform_12, window_bounds = array<i64: 16, 32>}, {transform_indices = @transform_13, window_bounds = array<i64: 2, 4, 8, 8>}]} {
    %c0 = arith.constant 0 : index
    %c0_0 = arith.constant 0 : index
    %0 = vector.load %arg1[%c0, %c0_0] : memref<16x32xbf16, #tpu.memory_space<vmem>>, vector<16x32xbf16>
    %c0_1 = arith.constant 0 : index
    %c0_2 = arith.constant 0 : index
    %1 = vector.load %arg4[%c0_1, %c0_2] : memref<32x32xbf16, #tpu.memory_space<vmem>>, vector<32x32xbf16>
    %cst = arith.constant dense<0.000000e+00> : vector<16x32xf32>
    %2 = tpu.matmul %0, %1, %cst {dimension_numbers = #tpu.dot_dimension_numbers<[1], [0], [0], [1], [0, 0, 1, 1], [], []>} : vector<16x32xbf16>, vector<32x32xbf16>, vector<16x32xf32> -> vector<16x32xf32>
    %c0_3 = arith.constant 0 : index
    %c0_4 = arith.constant 0 : index
    %3 = vector.load %arg8[%c0_3, %c0_4] : memref<1x32xf32, #tpu.memory_space<vmem>>, vector<1x32xf32>
    %4 = vector.broadcast %3 : vector<1x32xf32> to vector<16x32xf32>
    %5 = arith.addf %2, %4 : vector<16x32xf32>
    %c0_5 = arith.constant 0 : index
    %c0_6 = arith.constant 0 : index
    %6 = vector.load %arg2[%c0_5, %c0_6] : memref<16x32xbf16, #tpu.memory_space<vmem>>, vector<16x32xbf16>
    %c0_7 = arith.constant 0 : index
    %c0_8 = arith.constant 0 : index
    %7 = vector.load %arg5[%c0_7, %c0_8] : memref<32x32xbf16, #tpu.memory_space<vmem>>, vector<32x32xbf16>
    %cst_9 = arith.constant dense<0.000000e+00> : vector<16x32xf32>
    %8 = tpu.matmul %6, %7, %cst_9 {dimension_numbers = #tpu.dot_dimension_numbers<[1], [0], [0], [1], [0, 0, 1, 1], [], []>} : vector<16x32xbf16>, vector<32x32xbf16>, vector<16x32xf32> -> vector<16x32xf32>
    %c0_10 = arith.constant 0 : index
    %c0_11 = arith.constant 0 : index
    %9 = vector.load %arg9[%c0_10, %c0_11] : memref<1x32xf32, #tpu.memory_space<vmem>>, vector<1x32xf32>
    %10 = vector.broadcast %9 : vector<1x32xf32> to vector<16x32xf32>
    %11 = arith.addf %8, %10 : vector<16x32xf32>
    %c0_12 = arith.constant 0 : index
    %c0_13 = arith.constant 0 : index
    %12 = vector.load %arg3[%c0_12, %c0_13] : memref<16x32xbf16, #tpu.memory_space<vmem>>, vector<16x32xbf16>
    %c0_14 = arith.constant 0 : index
    %c0_15 = arith.constant 0 : index
    %13 = vector.load %arg6[%c0_14, %c0_15] : memref<32x32xbf16, #tpu.memory_space<vmem>>, vector<32x32xbf16>
    %cst_16 = arith.constant dense<0.000000e+00> : vector<16x32xf32>
    %14 = tpu.matmul %12, %13, %cst_16 {dimension_numbers = #tpu.dot_dimension_numbers<[1], [0], [0], [1], [0, 0, 1, 1], [], []>} : vector<16x32xbf16>, vector<32x32xbf16>, vector<16x32xf32> -> vector<16x32xf32>
    %c0_17 = arith.constant 0 : index
    %c0_18 = arith.constant 0 : index
    %15 = vector.load %arg10[%c0_17, %c0_18] : memref<1x32xf32, #tpu.memory_space<vmem>>, vector<1x32xf32>
    %16 = vector.broadcast %15 : vector<1x32xf32> to vector<16x32xf32>
    %17 = arith.addf %14, %16 : vector<16x32xf32>
    %18 = arith.truncf %5 : vector<16x32xf32> to vector<16x32xbf16>
    %19 = arith.truncf %11 : vector<16x32xf32> to vector<16x32xbf16>
    %20 = arith.truncf %17 : vector<16x32xf32> to vector<16x32xbf16>
    %c0_19 = arith.constant 0 : index
    %c0_20 = arith.constant 0 : index
    %21 = vector.load %arg7[%c0_19, %c0_20] : memref<32x32xbf16, #tpu.memory_space<vmem>>, vector<32x32xbf16>
    %c0_21 = arith.constant 0 : index
    %c0_22 = arith.constant 0 : index
    %22 = vector.load %arg11[%c0_21, %c0_22] : memref<1x32xf32, #tpu.memory_space<vmem>>, vector<1x32xf32>
    %c0_23 = arith.constant 0 : index
    %c0_24 = arith.constant 0 : index
    %c0_25 = arith.constant 0 : index
    %23 = vector.load %arg12[%c0_23, %c0_24, %c0_25] : memref<2x8x8xi32, #tpu.memory_space<vmem>>, vector<1x8x8xi32>
    %24 = vector.shape_cast %23 : vector<1x8x8xi32> to vector<8x8xi32>
    %c0_i32 = arith.constant 0 : i32
    %25 = vector.broadcast %c0_i32 : i32 to vector<8x8xi32>
    %26 = arith.cmpi sgt, %24, %25 : vector<8x8xi32>
    %27 = vector.extract_strided_slice %18 {offsets = [0, 0], sizes = [8, 32], strides = [1, 1]} : vector<16x32xbf16> to vector<8x32xbf16>
    %28 = vector.extract_strided_slice %19 {offsets = [0, 0], sizes = [8, 32], strides = [1, 1]} : vector<16x32xbf16> to vector<8x32xbf16>
    %29 = vector.extract_strided_slice %20 {offsets = [0, 0], sizes = [8, 32], strides = [1, 1]} : vector<16x32xbf16> to vector<8x32xbf16>
    %cst_26 = arith.constant 0.000000e+00 : f32
    %30 = vector.broadcast %cst_26 : f32 to vector<8x32xf32>
    %31 = vector.extract_strided_slice %27 {offsets = [0, 0], sizes = [8, 8], strides = [1, 1]} : vector<8x32xbf16> to vector<8x8xbf16>
    %32 = vector.extract_strided_slice %28 {offsets = [0, 0], sizes = [8, 8], strides = [1, 1]} : vector<8x32xbf16> to vector<8x8xbf16>
    %cst_27 = arith.constant dense<0.000000e+00> : vector<8x8xf32>
    %33 = tpu.matmul %31, %32, %cst_27 {dimension_numbers = #tpu.dot_dimension_numbers<[1], [1], [0], [0], [0, 0, 1, 0], [], []>} : vector<8x8xbf16>, vector<8x8xbf16>, vector<8x8xf32> -> vector<8x8xf32>
    %cst_28 = arith.constant -1.000000e+10 : f32
    %34 = vector.broadcast %cst_28 : f32 to vector<8x8xf32>
    %35 = arith.select %26, %34, %33 : vector<8x8xi1>, vector<8x8xf32>
    %cst_29 = arith.constant dense<0xFF800000> : vector<8xf32>
    %36 = vector.multi_reduction <maximumf>, %35, %cst_29 [1] : vector<8x8xf32> to vector<8xf32>
    %37 = vector.shape_cast %36 : vector<8xf32> to vector<8x1xf32>
    %38 = vector.broadcast %37 : vector<8x1xf32> to vector<8x8xf32>
    %39 = arith.subf %35, %38 : vector<8x8xf32>
    %40 = math.exp %39 : vector<8x8xf32>
    %cst_30 = arith.constant dense<0.000000e+00> : vector<8xf32>
    %41 = vector.multi_reduction <add>, %40, %cst_30 [1] : vector<8x8xf32> to vector<8xf32>
    %42 = vector.shape_cast %41 : vector<8xf32> to vector<8x1xf32>
    %43 = tpu.reciprocal %42 {approx = true} : vector<8x1xf32> -> vector<8x1xf32>
    %44 = vector.broadcast %43 : vector<8x1xf32> to vector<8x8xf32>
    %45 = arith.mulf %40, %44 : vector<8x8xf32>
    %c0_31 = arith.constant 0 : index
    %c0_32 = arith.constant 0 : index
    %c0_33 = arith.constant 0 : index
    %c0_34 = arith.constant 0 : index
    %46 = vector.load %arg14[%c0_31, %c0_32, %c0_33, %c0_34] : memref<2x4x8x8xf32, #tpu.memory_space<vmem>>, vector<1x1x8x8xf32>
    %47 = vector.shape_cast %46 : vector<1x1x8x8xf32> to vector<8x8xf32>
    %48 = vector.shape_cast %45 : vector<8x8xf32> to vector<1x1x8x8xf32>
    tpu.vector_store %arg14[%c0_31, %c0_32, %c0_33, %c0_34], %48 {strides = array<i32>} : memref<2x4x8x8xf32, #tpu.memory_space<vmem>>, vector<1x1x8x8xf32>,
    %49 = arith.truncf %45 : vector<8x8xf32> to vector<8x8xbf16>
    %50 = vector.extract_strided_slice %29 {offsets = [0, 0], sizes = [8, 8], strides = [1, 1]} : vector<8x32xbf16> to vector<8x8xbf16>
    %cst_35 = arith.constant dense<0.000000e+00> : vector<8x8xf32>
    %51 = tpu.matmul %49, %50, %cst_35 {dimension_numbers = #tpu.dot_dimension_numbers<[1], [0], [0], [1], [0, 0, 1, 1], [], []>} : vector<8x8xbf16>, vector<8x8xbf16>, vector<8x8xf32> -> vector<8x8xf32>
    %52 = arith.truncf %51 : vector<8x8xf32> to vector<8x8xbf16>
    %53 = vector.extract_strided_slice %21 {offsets = [0, 0], sizes = [8, 32], strides = [1, 1]} : vector<32x32xbf16> to vector<8x32xbf16>
    %cst_36 = arith.constant dense<0.000000e+00> : vector<8x32xf32>
    %54 = tpu.matmul %52, %53, %cst_36 {dimension_numbers = #tpu.dot_dimension_numbers<[1], [0], [0], [1], [0, 0, 1, 1], [], []>} : vector<8x8xbf16>, vector<8x32xbf16>, vector<8x32xf32> -> vector<8x32xf32>
    %55 = arith.addf %30, %54 : vector<8x32xf32>
    %56 = vector.extract_strided_slice %27 {offsets = [0, 8], sizes = [8, 8], strides = [1, 1]} : vector<8x32xbf16> to vector<8x8xbf16>
    %57 = vector.extract_strided_slice %28 {offsets = [0, 8], sizes = [8, 8], strides = [1, 1]} : vector<8x32xbf16> to vector<8x8xbf16>
    %cst_37 = arith.constant dense<0.000000e+00> : vector<8x8xf32>
    %58 = tpu.matmul %56, %57, %cst_37 {dimension_numbers = #tpu.dot_dimension_numbers<[1], [1], [0], [0], [0, 0, 1, 0], [], []>} : vector<8x8xbf16>, vector<8x8xbf16>, vector<8x8xf32> -> vector<8x8xf32>
    %cst_38 = arith.constant -1.000000e+10 : f32
    %59 = vector.broadcast %cst_38 : f32 to vector<8x8xf32>
    %60 = arith.select %26, %59, %58 : vector<8x8xi1>, vector<8x8xf32>
    %cst_39 = arith.constant dense<0xFF800000> : vector<8xf32>
    %61 = vector.multi_reduction <maximumf>, %60, %cst_39 [1] : vector<8x8xf32> to vector<8xf32>
    %62 = vector.shape_cast %61 : vector<8xf32> to vector<8x1xf32>
    %63 = vector.broadcast %62 : vector<8x1xf32> to vector<8x8xf32>
    %64 = arith.subf %60, %63 : vector<8x8xf32>
    %65 = math.exp %64 : vector<8x8xf32>
    %cst_40 = arith.constant dense<0.000000e+00> : vector<8xf32>
    %66 = vector.multi_reduction <add>, %65, %cst_40 [1] : vector<8x8xf32> to vector<8xf32>
    %67 = vector.shape_cast %66 : vector<8xf32> to vector<8x1xf32>
    %68 = tpu.reciprocal %67 {approx = true} : vector<8x1xf32> -> vector<8x1xf32>
    %69 = vector.broadcast %68 : vector<8x1xf32> to vector<8x8xf32>
    %70 = arith.mulf %65, %69 : vector<8x8xf32>
    %c0_41 = arith.constant 0 : index
    %c1 = arith.constant 1 : index
    %c0_42 = arith.constant 0 : index
    %c0_43 = arith.constant 0 : index
    %71 = vector.load %arg14[%c0_41, %c1, %c0_42, %c0_43] : memref<2x4x8x8xf32, #tpu.memory_space<vmem>>, vector<1x1x8x8xf32>
    %72 = vector.shape_cast %71 : vector<1x1x8x8xf32> to vector<8x8xf32>
    %73 = vector.shape_cast %70 : vector<8x8xf32> to vector<1x1x8x8xf32>
    tpu.vector_store %arg14[%c0_41, %c1, %c0_42, %c0_43], %73 {strides = array<i32>} : memref<2x4x8x8xf32, #tpu.memory_space<vmem>>, vector<1x1x8x8xf32>,
    %74 = arith.truncf %70 : vector<8x8xf32> to vector<8x8xbf16>
    %75 = vector.extract_strided_slice %29 {offsets = [0, 8], sizes = [8, 8], strides = [1, 1]} : vector<8x32xbf16> to vector<8x8xbf16>
    %cst_44 = arith.constant dense<0.000000e+00> : vector<8x8xf32>
    %76 = tpu.matmul %74, %75, %cst_44 {dimension_numbers = #tpu.dot_dimension_numbers<[1], [0], [0], [1], [0, 0, 1, 1], [], []>} : vector<8x8xbf16>, vector<8x8xbf16>, vector<8x8xf32> -> vector<8x8xf32>
    %77 = arith.truncf %76 : vector<8x8xf32> to vector<8x8xbf16>
    %78 = vector.extract_strided_slice %21 {offsets = [8, 0], sizes = [8, 32], strides = [1, 1]} : vector<32x32xbf16> to vector<8x32xbf16>
    %cst_45 = arith.constant dense<0.000000e+00> : vector<8x32xf32>
    %79 = tpu.matmul %77, %78, %cst_45 {dimension_numbers = #tpu.dot_dimension_numbers<[1], [0], [0], [1], [0, 0, 1, 1], [], []>} : vector<8x8xbf16>, vector<8x32xbf16>, vector<8x32xf32> -> vector<8x32xf32>
    %80 = arith.addf %55, %79 : vector<8x32xf32>
    %81 = vector.extract_strided_slice %27 {offsets = [0, 16], sizes = [8, 8], strides = [1, 1]} : vector<8x32xbf16> to vector<8x8xbf16>
    %82 = vector.extract_strided_slice %28 {offsets = [0, 16], sizes = [8, 8], strides = [1, 1]} : vector<8x32xbf16> to vector<8x8xbf16>
    %cst_46 = arith.constant dense<0.000000e+00> : vector<8x8xf32>
    %83 = tpu.matmul %81, %82, %cst_46 {dimension_numbers = #tpu.dot_dimension_numbers<[1], [1], [0], [0], [0, 0, 1, 0], [], []>} : vector<8x8xbf16>, vector<8x8xbf16>, vector<8x8xf32> -> vector<8x8xf32>
    %cst_47 = arith.constant -1.000000e+10 : f32
    %84 = vector.broadcast %cst_47 : f32 to vector<8x8xf32>
    %85 = arith.select %26, %84, %83 : vector<8x8xi1>, vector<8x8xf32>
    %cst_48 = arith.constant dense<0xFF800000> : vector<8xf32>
    %86 = vector.multi_reduction <maximumf>, %85, %cst_48 [1] : vector<8x8xf32> to vector<8xf32>
    %87 = vector.shape_cast %86 : vector<8xf32> to vector<8x1xf32>
    %88 = vector.broadcast %87 : vector<8x1xf32> to vector<8x8xf32>
    %89 = arith.subf %85, %88 : vector<8x8xf32>
    %90 = math.exp %89 : vector<8x8xf32>
    %cst_49 = arith.constant dense<0.000000e+00> : vector<8xf32>
    %91 = vector.multi_reduction <add>, %90, %cst_49 [1] : vector<8x8xf32> to vector<8xf32>
    %92 = vector.shape_cast %91 : vector<8xf32> to vector<8x1xf32>
    %93 = tpu.reciprocal %92 {approx = true} : vector<8x1xf32> -> vector<8x1xf32>
    %94 = vector.broadcast %93 : vector<8x1xf32> to vector<8x8xf32>
    %95 = arith.mulf %90, %94 : vector<8x8xf32>
    %c0_50 = arith.constant 0 : index
    %c2 = arith.constant 2 : index
    %c0_51 = arith.constant 0 : index
    %c0_52 = arith.constant 0 : index
    %96 = vector.load %arg14[%c0_50, %c2, %c0_51, %c0_52] : memref<2x4x8x8xf32, #tpu.memory_space<vmem>>, vector<1x1x8x8xf32>
    %97 = vector.shape_cast %96 : vector<1x1x8x8xf32> to vector<8x8xf32>
    %98 = vector.shape_cast %95 : vector<8x8xf32> to vector<1x1x8x8xf32>
    tpu.vector_store %arg14[%c0_50, %c2, %c0_51, %c0_52], %98 {strides = array<i32>} : memref<2x4x8x8xf32, #tpu.memory_space<vmem>>, vector<1x1x8x8xf32>,
    %99 = arith.truncf %95 : vector<8x8xf32> to vector<8x8xbf16>
    %100 = vector.extract_strided_slice %29 {offsets = [0, 16], sizes = [8, 8], strides = [1, 1]} : vector<8x32xbf16> to vector<8x8xbf16>
    %cst_53 = arith.constant dense<0.000000e+00> : vector<8x8xf32>
    %101 = tpu.matmul %99, %100, %cst_53 {dimension_numbers = #tpu.dot_dimension_numbers<[1], [0], [0], [1], [0, 0, 1, 1], [], []>} : vector<8x8xbf16>, vector<8x8xbf16>, vector<8x8xf32> -> vector<8x8xf32>
    %102 = arith.truncf %101 : vector<8x8xf32> to vector<8x8xbf16>
    %103 = vector.extract_strided_slice %21 {offsets = [16, 0], sizes = [8, 32], strides = [1, 1]} : vector<32x32xbf16> to vector<8x32xbf16>
    %cst_54 = arith.constant dense<0.000000e+00> : vector<8x32xf32>
    %104 = tpu.matmul %102, %103, %cst_54 {dimension_numbers = #tpu.dot_dimension_numbers<[1], [0], [0], [1], [0, 0, 1, 1], [], []>} : vector<8x8xbf16>, vector<8x32xbf16>, vector<8x32xf32> -> vector<8x32xf32>
    %105 = arith.addf %80, %104 : vector<8x32xf32>
    %106 = vector.extract_strided_slice %27 {offsets = [0, 24], sizes = [8, 8], strides = [1, 1]} : vector<8x32xbf16> to vector<8x8xbf16>
    %107 = vector.extract_strided_slice %28 {offsets = [0, 24], sizes = [8, 8], strides = [1, 1]} : vector<8x32xbf16> to vector<8x8xbf16>
    %cst_55 = arith.constant dense<0.000000e+00> : vector<8x8xf32>
    %108 = tpu.matmul %106, %107, %cst_55 {dimension_numbers = #tpu.dot_dimension_numbers<[1], [1], [0], [0], [0, 0, 1, 0], [], []>} : vector<8x8xbf16>, vector<8x8xbf16>, vector<8x8xf32> -> vector<8x8xf32>
    %cst_56 = arith.constant -1.000000e+10 : f32
    %109 = vector.broadcast %cst_56 : f32 to vector<8x8xf32>
    %110 = arith.select %26, %109, %108 : vector<8x8xi1>, vector<8x8xf32>
    %cst_57 = arith.constant dense<0xFF800000> : vector<8xf32>
    %111 = vector.multi_reduction <maximumf>, %110, %cst_57 [1] : vector<8x8xf32> to vector<8xf32>
    %112 = vector.shape_cast %111 : vector<8xf32> to vector<8x1xf32>
    %113 = vector.broadcast %112 : vector<8x1xf32> to vector<8x8xf32>
    %114 = arith.subf %110, %113 : vector<8x8xf32>
    %115 = math.exp %114 : vector<8x8xf32>
    %cst_58 = arith.constant dense<0.000000e+00> : vector<8xf32>
    %116 = vector.multi_reduction <add>, %115, %cst_58 [1] : vector<8x8xf32> to vector<8xf32>
    %117 = vector.shape_cast %116 : vector<8xf32> to vector<8x1xf32>
    %118 = tpu.reciprocal %117 {approx = true} : vector<8x1xf32> -> vector<8x1xf32>
    %119 = vector.broadcast %118 : vector<8x1xf32> to vector<8x8xf32>
    %120 = arith.mulf %115, %119 : vector<8x8xf32>
    %c0_59 = arith.constant 0 : index
    %c3 = arith.constant 3 : index
    %c0_60 = arith.constant 0 : index
    %c0_61 = arith.constant 0 : index
    %121 = vector.load %arg14[%c0_59, %c3, %c0_60, %c0_61] : memref<2x4x8x8xf32, #tpu.memory_space<vmem>>, vector<1x1x8x8xf32>
    %122 = vector.shape_cast %121 : vector<1x1x8x8xf32> to vector<8x8xf32>
    %123 = vector.shape_cast %120 : vector<8x8xf32> to vector<1x1x8x8xf32>
    tpu.vector_store %arg14[%c0_59, %c3, %c0_60, %c0_61], %123 {strides = array<i32>} : memref<2x4x8x8xf32, #tpu.memory_space<vmem>>, vector<1x1x8x8xf32>,
    %124 = arith.truncf %120 : vector<8x8xf32> to vector<8x8xbf16>
    %125 = vector.extract_strided_slice %29 {offsets = [0, 24], sizes = [8, 8], strides = [1, 1]} : vector<8x32xbf16> to vector<8x8xbf16>
    %cst_62 = arith.constant dense<0.000000e+00> : vector<8x8xf32>
    %126 = tpu.matmul %124, %125, %cst_62 {dimension_numbers = #tpu.dot_dimension_numbers<[1], [0], [0], [1], [0, 0, 1, 1], [], []>} : vector<8x8xbf16>, vector<8x8xbf16>, vector<8x8xf32> -> vector<8x8xf32>
    %127 = arith.truncf %126 : vector<8x8xf32> to vector<8x8xbf16>
    %128 = vector.extract_strided_slice %21 {offsets = [24, 0], sizes = [8, 32], strides = [1, 1]} : vector<32x32xbf16> to vector<8x32xbf16>
    %cst_63 = arith.constant dense<0.000000e+00> : vector<8x32xf32>
    %129 = tpu.matmul %127, %128, %cst_63 {dimension_numbers = #tpu.dot_dimension_numbers<[1], [0], [0], [1], [0, 0, 1, 1], [], []>} : vector<8x8xbf16>, vector<8x32xbf16>, vector<8x32xf32> -> vector<8x32xf32>
    %130 = arith.addf %105, %129 : vector<8x32xf32>
    %131 = vector.broadcast %22 : vector<1x32xf32> to vector<8x32xf32>
    %132 = arith.addf %130, %131 : vector<8x32xf32>
    %c0_64 = arith.constant 0 : index
    %c0_65 = arith.constant 0 : index
    %133 = vector.load %arg13[%c0_64, %c0_65] : memref<16x32xf32, #tpu.memory_space<vmem>>, vector<8x32xf32>
    tpu.vector_store %arg13[%c0_64, %c0_65], %132 {strides = array<i32>} : memref<16x32xf32, #tpu.memory_space<vmem>>, vector<8x32xf32>,
    %c1_66 = arith.constant 1 : index
    %c0_67 = arith.constant 0 : index
    %c0_68 = arith.constant 0 : index
    %134 = vector.load %arg12[%c1_66, %c0_67, %c0_68] : memref<2x8x8xi32, #tpu.memory_space<vmem>>, vector<1x8x8xi32>
    %135 = vector.shape_cast %134 : vector<1x8x8xi32> to vector<8x8xi32>
    %c0_i32_69 = arith.constant 0 : i32
    %136 = vector.broadcast %c0_i32_69 : i32 to vector<8x8xi32>
    %137 = arith.cmpi sgt, %135, %136 : vector<8x8xi32>
    %138 = vector.extract_strided_slice %18 {offsets = [8, 0], sizes = [8, 32], strides = [1, 1]} : vector<16x32xbf16> to vector<8x32xbf16>
    %139 = vector.extract_strided_slice %19 {offsets = [8, 0], sizes = [8, 32], strides = [1, 1]} : vector<16x32xbf16> to vector<8x32xbf16>
    %140 = vector.extract_strided_slice %20 {offsets = [8, 0], sizes = [8, 32], strides = [1, 1]} : vector<16x32xbf16> to vector<8x32xbf16>
    %cst_70 = arith.constant 0.000000e+00 : f32
    %141 = vector.broadcast %cst_70 : f32 to vector<8x32xf32>
    %142 = vector.extract_strided_slice %138 {offsets = [0, 0], sizes = [8, 8], strides = [1, 1]} : vector<8x32xbf16> to vector<8x8xbf16>
    %143 = vector.extract_strided_slice %139 {offsets = [0, 0], sizes = [8, 8], strides = [1, 1]} : vector<8x32xbf16> to vector<8x8xbf16>
    %cst_71 = arith.constant dense<0.000000e+00> : vector<8x8xf32>
    %144 = tpu.matmul %142, %143, %cst_71 {dimension_numbers = #tpu.dot_dimension_numbers<[1], [1], [0], [0], [0, 0, 1, 0], [], []>} : vector<8x8xbf16>, vector<8x8xbf16>, vector<8x8xf32> -> vector<8x8xf32>
    %cst_72 = arith.constant -1.000000e+10 : f32
    %145 = vector.broadcast %cst_72 : f32 to vector<8x8xf32>
    %146 = arith.select %137, %145, %144 : vector<8x8xi1>, vector<8x8xf32>
    %cst_73 = arith.constant dense<0xFF800000> : vector<8xf32>
    %147 = vector.multi_reduction <maximumf>, %146, %cst_73 [1] : vector<8x8xf32> to vector<8xf32>
    %148 = vector.shape_cast %147 : vector<8xf32> to vector<8x1xf32>
    %149 = vector.broadcast %148 : vector<8x1xf32> to vector<8x8xf32>
    %150 = arith.subf %146, %149 : vector<8x8xf32>
    %151 = math.exp %150 : vector<8x8xf32>
    %cst_74 = arith.constant dense<0.000000e+00> : vector<8xf32>
    %152 = vector.multi_reduction <add>, %151, %cst_74 [1] : vector<8x8xf32> to vector<8xf32>
    %153 = vector.shape_cast %152 : vector<8xf32> to vector<8x1xf32>
    %154 = tpu.reciprocal %153 {approx = true} : vector<8x1xf32> -> vector<8x1xf32>
    %155 = vector.broadcast %154 : vector<8x1xf32> to vector<8x8xf32>
    %156 = arith.mulf %151, %155 : vector<8x8xf32>
    %c1_75 = arith.constant 1 : index
    %c0_76 = arith.constant 0 : index
    %c0_77 = arith.constant 0 : index
    %c0_78 = arith.constant 0 : index
    %157 = vector.load %arg14[%c1_75, %c0_76, %c0_77, %c0_78] : memref<2x4x8x8xf32, #tpu.memory_space<vmem>>, vector<1x1x8x8xf32>
    %158 = vector.shape_cast %157 : vector<1x1x8x8xf32> to vector<8x8xf32>
    %159 = vector.shape_cast %156 : vector<8x8xf32> to vector<1x1x8x8xf32>
    tpu.vector_store %arg14[%c1_75, %c0_76, %c0_77, %c0_78], %159 {strides = array<i32>} : memref<2x4x8x8xf32, #tpu.memory_space<vmem>>, vector<1x1x8x8xf32>,
    %160 = arith.truncf %156 : vector<8x8xf32> to vector<8x8xbf16>
    %161 = vector.extract_strided_slice %140 {offsets = [0, 0], sizes = [8, 8], strides = [1, 1]} : vector<8x32xbf16> to vector<8x8xbf16>
    %cst_79 = arith.constant dense<0.000000e+00> : vector<8x8xf32>
    %162 = tpu.matmul %160, %161, %cst_79 {dimension_numbers = #tpu.dot_dimension_numbers<[1], [0], [0], [1], [0, 0, 1, 1], [], []>} : vector<8x8xbf16>, vector<8x8xbf16>, vector<8x8xf32> -> vector<8x8xf32>
    %163 = arith.truncf %162 : vector<8x8xf32> to vector<8x8xbf16>
    %164 = vector.extract_strided_slice %21 {offsets = [0, 0], sizes = [8, 32], strides = [1, 1]} : vector<32x32xbf16> to vector<8x32xbf16>
    %cst_80 = arith.constant dense<0.000000e+00> : vector<8x32xf32>
    %165 = tpu.matmul %163, %164, %cst_80 {dimension_numbers = #tpu.dot_dimension_numbers<[1], [0], [0], [1], [0, 0, 1, 1], [], []>} : vector<8x8xbf16>, vector<8x32xbf16>, vector<8x32xf32> -> vector<8x32xf32>
    %166 = arith.addf %141, %165 : vector<8x32xf32>
    %167 = vector.extract_strided_slice %138 {offsets = [0, 8], sizes = [8, 8], strides = [1, 1]} : vector<8x32xbf16> to vector<8x8xbf16>
    %168 = vector.extract_strided_slice %139 {offsets = [0, 8], sizes = [8, 8], strides = [1, 1]} : vector<8x32xbf16> to vector<8x8xbf16>
    %cst_81 = arith.constant dense<0.000000e+00> : vector<8x8xf32>
    %169 = tpu.matmul %167, %168, %cst_81 {dimension_numbers = #tpu.dot_dimension_numbers<[1], [1], [0], [0], [0, 0, 1, 0], [], []>} : vector<8x8xbf16>, vector<8x8xbf16>, vector<8x8xf32> -> vector<8x8xf32>
    %cst_82 = arith.constant -1.000000e+10 : f32
    %170 = vector.broadcast %cst_82 : f32 to vector<8x8xf32>
    %171 = arith.select %137, %170, %169 : vector<8x8xi1>, vector<8x8xf32>
    %cst_83 = arith.constant dense<0xFF800000> : vector<8xf32>
    %172 = vector.multi_reduction <maximumf>, %171, %cst_83 [1] : vector<8x8xf32> to vector<8xf32>
    %173 = vector.shape_cast %172 : vector<8xf32> to vector<8x1xf32>
    %174 = vector.broadcast %173 : vector<8x1xf32> to vector<8x8xf32>
    %175 = arith.subf %171, %174 : vector<8x8xf32>
    %176 = math.exp %175 : vector<8x8xf32>
    %cst_84 = arith.constant dense<0.000000e+00> : vector<8xf32>
    %177 = vector.multi_reduction <add>, %176, %cst_84 [1] : vector<8x8xf32> to vector<8xf32>
    %178 = vector.shape_cast %177 : vector<8xf32> to vector<8x1xf32>
    %179 = tpu.reciprocal %178 {approx = true} : vector<8x1xf32> -> vector<8x1xf32>
    %180 = vector.broadcast %179 : vector<8x1xf32> to vector<8x8xf32>
    %181 = arith.mulf %176, %180 : vector<8x8xf32>
    %c1_85 = arith.constant 1 : index
    %c1_86 = arith.constant 1 : index
    %c0_87 = arith.constant 0 : index
    %c0_88 = arith.constant 0 : index
    %182 = vector.load %arg14[%c1_85, %c1_86, %c0_87, %c0_88] : memref<2x4x8x8xf32, #tpu.memory_space<vmem>>, vector<1x1x8x8xf32>
    %183 = vector.shape_cast %182 : vector<1x1x8x8xf32> to vector<8x8xf32>
    %184 = vector.shape_cast %181 : vector<8x8xf32> to vector<1x1x8x8xf32>
    tpu.vector_store %arg14[%c1_85, %c1_86, %c0_87, %c0_88], %184 {strides = array<i32>} : memref<2x4x8x8xf32, #tpu.memory_space<vmem>>, vector<1x1x8x8xf32>,
    %185 = arith.truncf %181 : vector<8x8xf32> to vector<8x8xbf16>
    %186 = vector.extract_strided_slice %140 {offsets = [0, 8], sizes = [8, 8], strides = [1, 1]} : vector<8x32xbf16> to vector<8x8xbf16>
    %cst_89 = arith.constant dense<0.000000e+00> : vector<8x8xf32>
    %187 = tpu.matmul %185, %186, %cst_89 {dimension_numbers = #tpu.dot_dimension_numbers<[1], [0], [0], [1], [0, 0, 1, 1], [], []>} : vector<8x8xbf16>, vector<8x8xbf16>, vector<8x8xf32> -> vector<8x8xf32>
    %188 = arith.truncf %187 : vector<8x8xf32> to vector<8x8xbf16>
    %189 = vector.extract_strided_slice %21 {offsets = [8, 0], sizes = [8, 32], strides = [1, 1]} : vector<32x32xbf16> to vector<8x32xbf16>
    %cst_90 = arith.constant dense<0.000000e+00> : vector<8x32xf32>
    %190 = tpu.matmul %188, %189, %cst_90 {dimension_numbers = #tpu.dot_dimension_numbers<[1], [0], [0], [1], [0, 0, 1, 1], [], []>} : vector<8x8xbf16>, vector<8x32xbf16>, vector<8x32xf32> -> vector<8x32xf32>
    %191 = arith.addf %166, %190 : vector<8x32xf32>
    %192 = vector.extract_strided_slice %138 {offsets = [0, 16], sizes = [8, 8], strides = [1, 1]} : vector<8x32xbf16> to vector<8x8xbf16>
    %193 = vector.extract_strided_slice %139 {offsets = [0, 16], sizes = [8, 8], strides = [1, 1]} : vector<8x32xbf16> to vector<8x8xbf16>
    %cst_91 = arith.constant dense<0.000000e+00> : vector<8x8xf32>
    %194 = tpu.matmul %192, %193, %cst_91 {dimension_numbers = #tpu.dot_dimension_numbers<[1], [1], [0], [0], [0, 0, 1, 0], [], []>} : vector<8x8xbf16>, vector<8x8xbf16>, vector<8x8xf32> -> vector<8x8xf32>
    %cst_92 = arith.constant -1.000000e+10 : f32
    %195 = vector.broadcast %cst_92 : f32 to vector<8x8xf32>
    %196 = arith.select %137, %195, %194 : vector<8x8xi1>, vector<8x8xf32>
    %cst_93 = arith.constant dense<0xFF800000> : vector<8xf32>
    %197 = vector.multi_reduction <maximumf>, %196, %cst_93 [1] : vector<8x8xf32> to vector<8xf32>
    %198 = vector.shape_cast %197 : vector<8xf32> to vector<8x1xf32>
    %199 = vector.broadcast %198 : vector<8x1xf32> to vector<8x8xf32>
    %200 = arith.subf %196, %199 : vector<8x8xf32>
    %201 = math.exp %200 : vector<8x8xf32>
    %cst_94 = arith.constant dense<0.000000e+00> : vector<8xf32>
    %202 = vector.multi_reduction <add>, %201, %cst_94 [1] : vector<8x8xf32> to vector<8xf32>
    %203 = vector.shape_cast %202 : vector<8xf32> to vector<8x1xf32>
    %204 = tpu.reciprocal %203 {approx = true} : vector<8x1xf32> -> vector<8x1xf32>
    %205 = vector.broadcast %204 : vector<8x1xf32> to vector<8x8xf32>
    %206 = arith.mulf %201, %205 : vector<8x8xf32>
    %c1_95 = arith.constant 1 : index
    %c2_96 = arith.constant 2 : index
    %c0_97 = arith.constant 0 : index
    %c0_98 = arith.constant 0 : index
    %207 = vector.load %arg14[%c1_95, %c2_96, %c0_97, %c0_98] : memref<2x4x8x8xf32, #tpu.memory_space<vmem>>, vector<1x1x8x8xf32>
    %208 = vector.shape_cast %207 : vector<1x1x8x8xf32> to vector<8x8xf32>
    %209 = vector.shape_cast %206 : vector<8x8xf32> to vector<1x1x8x8xf32>
    tpu.vector_store %arg14[%c1_95, %c2_96, %c0_97, %c0_98], %209 {strides = array<i32>} : memref<2x4x8x8xf32, #tpu.memory_space<vmem>>, vector<1x1x8x8xf32>,
    %210 = arith.truncf %206 : vector<8x8xf32> to vector<8x8xbf16>
    %211 = vector.extract_strided_slice %140 {offsets = [0, 16], sizes = [8, 8], strides = [1, 1]} : vector<8x32xbf16> to vector<8x8xbf16>
    %cst_99 = arith.constant dense<0.000000e+00> : vector<8x8xf32>
    %212 = tpu.matmul %210, %211, %cst_99 {dimension_numbers = #tpu.dot_dimension_numbers<[1], [0], [0], [1], [0, 0, 1, 1], [], []>} : vector<8x8xbf16>, vector<8x8xbf16>, vector<8x8xf32> -> vector<8x8xf32>
    %213 = arith.truncf %212 : vector<8x8xf32> to vector<8x8xbf16>
    %214 = vector.extract_strided_slice %21 {offsets = [16, 0], sizes = [8, 32], strides = [1, 1]} : vector<32x32xbf16> to vector<8x32xbf16>
    %cst_100 = arith.constant dense<0.000000e+00> : vector<8x32xf32>
    %215 = tpu.matmul %213, %214, %cst_100 {dimension_numbers = #tpu.dot_dimension_numbers<[1], [0], [0], [1], [0, 0, 1, 1], [], []>} : vector<8x8xbf16>, vector<8x32xbf16>, vector<8x32xf32> -> vector<8x32xf32>
    %216 = arith.addf %191, %215 : vector<8x32xf32>
    %217 = vector.extract_strided_slice %138 {offsets = [0, 24], sizes = [8, 8], strides = [1, 1]} : vector<8x32xbf16> to vector<8x8xbf16>
    %218 = vector.extract_strided_slice %139 {offsets = [0, 24], sizes = [8, 8], strides = [1, 1]} : vector<8x32xbf16> to vector<8x8xbf16>
    %cst_101 = arith.constant dense<0.000000e+00> : vector<8x8xf32>
    %219 = tpu.matmul %217, %218, %cst_101 {dimension_numbers = #tpu.dot_dimension_numbers<[1], [1], [0], [0], [0, 0, 1, 0], [], []>} : vector<8x8xbf16>, vector<8x8xbf16>, vector<8x8xf32> -> vector<8x8xf32>
    %cst_102 = arith.constant -1.000000e+10 : f32
    %220 = vector.broadcast %cst_102 : f32 to vector<8x8xf32>
    %221 = arith.select %137, %220, %219 : vector<8x8xi1>, vector<8x8xf32>
    %cst_103 = arith.constant dense<0xFF800000> : vector<8xf32>
    %222 = vector.multi_reduction <maximumf>, %221, %cst_103 [1] : vector<8x8xf32> to vector<8xf32>
    %223 = vector.shape_cast %222 : vector<8xf32> to vector<8x1xf32>
    %224 = vector.broadcast %223 : vector<8x1xf32> to vector<8x8xf32>
    %225 = arith.subf %221, %224 : vector<8x8xf32>
    %226 = math.exp %225 : vector<8x8xf32>
    %cst_104 = arith.constant dense<0.000000e+00> : vector<8xf32>
    %227 = vector.multi_reduction <add>, %226, %cst_104 [1] : vector<8x8xf32> to vector<8xf32>
    %228 = vector.shape_cast %227 : vector<8xf32> to vector<8x1xf32>
    %229 = tpu.reciprocal %228 {approx = true} : vector<8x1xf32> -> vector<8x1xf32>
    %230 = vector.broadcast %229 : vector<8x1xf32> to vector<8x8xf32>
    %231 = arith.mulf %226, %230 : vector<8x8xf32>
    %c1_105 = arith.constant 1 : index
    %c3_106 = arith.constant 3 : index
    %c0_107 = arith.constant 0 : index
    %c0_108 = arith.constant 0 : index
    %232 = vector.load %arg14[%c1_105, %c3_106, %c0_107, %c0_108] : memref<2x4x8x8xf32, #tpu.memory_space<vmem>>, vector<1x1x8x8xf32>
    %233 = vector.shape_cast %232 : vector<1x1x8x8xf32> to vector<8x8xf32>
    %234 = vector.shape_cast %231 : vector<8x8xf32> to vector<1x1x8x8xf32>
    tpu.vector_store %arg14[%c1_105, %c3_106, %c0_107, %c0_108], %234 {strides = array<i32>} : memref<2x4x8x8xf32, #tpu.memory_space<vmem>>, vector<1x1x8x8xf32>,
    %235 = arith.truncf %231 : vector<8x8xf32> to vector<8x8xbf16>
    %236 = vector.extract_strided_slice %140 {offsets = [0, 24], sizes = [8, 8], strides = [1, 1]} : vector<8x32xbf16> to vector<8x8xbf16>
    %cst_109 = arith.constant dense<0.000000e+00> : vector<8x8xf32>
    %237 = tpu.matmul %235, %236, %cst_109 {dimension_numbers = #tpu.dot_dimension_numbers<[1], [0], [0], [1], [0, 0, 1, 1], [], []>} : vector<8x8xbf16>, vector<8x8xbf16>, vector<8x8xf32> -> vector<8x8xf32>
    %238 = arith.truncf %237 : vector<8x8xf32> to vector<8x8xbf16>
    %239 = vector.extract_strided_slice %21 {offsets = [24, 0], sizes = [8, 32], strides = [1, 1]} : vector<32x32xbf16> to vector<8x32xbf16>
    %cst_110 = arith.constant dense<0.000000e+00> : vector<8x32xf32>
    %240 = tpu.matmul %238, %239, %cst_110 {dimension_numbers = #tpu.dot_dimension_numbers<[1], [0], [0], [1], [0, 0, 1, 1], [], []>} : vector<8x8xbf16>, vector<8x32xbf16>, vector<8x32xf32> -> vector<8x32xf32>
    %241 = arith.addf %216, %240 : vector<8x32xf32>
    %242 = vector.broadcast %22 : vector<1x32xf32> to vector<8x32xf32>
    %243 = arith.addf %241, %242 : vector<8x32xf32>
    %c8 = arith.constant 8 : index
    %c0_111 = arith.constant 0 : index
    %244 = vector.load %arg13[%c8, %c0_111] : memref<16x32xf32, #tpu.memory_space<vmem>>, vector<8x32xf32>
    tpu.vector_store %arg13[%c8, %c0_111], %243 {strides = array<i32>} : memref<16x32xf32, #tpu.memory_space<vmem>>, vector<8x32xf32>,
    return
  }
  func.func @transform_0(%arg0: i32) -> (i32, i32) {
    %c0_i32 = arith.constant 0 : i32
    %c0_i32_0 = arith.constant 0 : i32
    return %arg0, %c0_i32 : i32, i32
  }
  func.func @transform_1(%arg0: i32) -> (i32, i32) {
    %c0_i32 = arith.constant 0 : i32
    %c0_i32_0 = arith.constant 0 : i32
    return %arg0, %c0_i32 : i32, i32
  }
  func.func @transform_2(%arg0: i32) -> (i32, i32) {
    %c0_i32 = arith.constant 0 : i32
    %c0_i32_0 = arith.constant 0 : i32
    return %arg0, %c0_i32 : i32, i32
  }
  func.func @transform_3(%arg0: i32) -> (i32, i32) {
    %c0_i32 = arith.constant 0 : i32
    %c0_i32_0 = arith.constant 0 : i32
    %c0_i32_1 = arith.constant 0 : i32
    return %c0_i32, %c0_i32_0 : i32, i32
  }
  func.func @transform_4(%arg0: i32) -> (i32, i32) {
    %c0_i32 = arith.constant 0 : i32
    %c0_i32_0 = arith.constant 0 : i32
    %c0_i32_1 = arith.constant 0 : i32
    return %c0_i32, %c0_i32_0 : i32, i32
  }
  func.func @transform_5(%arg0: i32) -> (i32, i32) {
    %c0_i32 = arith.constant 0 : i32
    %c0_i32_0 = arith.constant 0 : i32
    %c0_i32_1 = arith.constant 0 : i32
    return %c0_i32, %c0_i32_0 : i32, i32
  }
  func.func @transform_6(%arg0: i32) -> (i32, i32) {
    %c0_i32 = arith.constant 0 : i32
    %c0_i32_0 = arith.constant 0 : i32
    %c0_i32_1 = arith.constant 0 : i32
    return %c0_i32, %c0_i32_0 : i32, i32
  }
  func.func @transform_7(%arg0: i32) -> (i32, i32) {
    %c0_i32 = arith.constant 0 : i32
    %c0_i32_0 = arith.constant 0 : i32
    %c0_i32_1 = arith.constant 0 : i32
    return %c0_i32, %c0_i32_0 : i32, i32
  }
  func.func @transform_8(%arg0: i32) -> (i32, i32) {
    %c0_i32 = arith.constant 0 : i32
    %c0_i32_0 = arith.constant 0 : i32
    %c0_i32_1 = arith.constant 0 : i32
    return %c0_i32, %c0_i32_0 : i32, i32
  }
  func.func @transform_9(%arg0: i32) -> (i32, i32) {
    %c0_i32 = arith.constant 0 : i32
    %c0_i32_0 = arith.constant 0 : i32
    %c0_i32_1 = arith.constant 0 : i32
    return %c0_i32, %c0_i32_0 : i32, i32
  }
  func.func @transform_10(%arg0: i32) -> (i32, i32) {
    %c0_i32 = arith.constant 0 : i32
    %c0_i32_0 = arith.constant 0 : i32
    %c0_i32_1 = arith.constant 0 : i32
    return %c0_i32, %c0_i32_0 : i32, i32
  }
  func.func @transform_11(%arg0: i32) -> (i32, i32, i32) {
    %c0_i32 = arith.constant 0 : i32
    %c0_i32_0 = arith.constant 0 : i32
    %c0_i32_1 = arith.constant 0 : i32
    return %arg0, %c0_i32, %c0_i32_0 : i32, i32, i32
  }
  func.func @transform_12(%arg0: i32) -> (i32, i32) {
    %c0_i32 = arith.constant 0 : i32
    %c0_i32_0 = arith.constant 0 : i32
    return %arg0, %c0_i32 : i32, i32
  }
  func.func @transform_13(%arg0: i32) -> (i32, i32, i32, i32) {
    %c0_i32 = arith.constant 0 : i32
    %c0_i32_0 = arith.constant 0 : i32
    %c0_i32_1 = arith.constant 0 : i32
    %c0_i32_2 = arith.constant 0 : i32
    return %arg0, %c0_i32, %c0_i32_0, %c0_i32_1 : i32, i32, i32, i32
  }
}

</mosaic_0001>

<llo_original>
// kernel: mha_forward.1
$region0: #{mha_forward.1}
  #allocation0 [shape = 'u32[]', space=smem, size = 0x4, offset = 0x4, fixed_abs, tag = 'smem constant byte address 0x4 - core index']
  #allocation1 [shape = 'u32[144,128]{1,0:T(1,128)}', space=vmem, size = 0x12000, scoped, tag = 'internal scratch']
  %s0 = inlined_call_operand.vmem [shape: bf16[16,32], index: 0, kind: input, shape index: {}]
  %s1 = inlined_call_operand.vmem [shape: bf16[16,32], index: 1, kind: input, shape index: {}]
  %s2 = inlined_call_operand.vmem [shape: bf16[16,32], index: 2, kind: input, shape index: {}]
  %s3 = inlined_call_operand.vmem [shape: bf16[32,32], index: 3, kind: input, shape index: {}]
  %s4 = inlined_call_operand.vmem [shape: bf16[32,32], index: 4, kind: input, shape index: {}]
  %s5 = inlined_call_operand.vmem [shape: bf16[32,32], index: 5, kind: input, shape index: {}]
  %s6 = inlined_call_operand.vmem [shape: bf16[32,32], index: 6, kind: input, shape index: {}]
  %s7 = inlined_call_operand.vmem [shape: f32[1,32], index: 7, kind: input, shape index: {}]
  %s8 = inlined_call_operand.vmem [shape: f32[1,32], index: 8, kind: input, shape index: {}]
  %s9 = inlined_call_operand.vmem [shape: f32[1,32], index: 9, kind: input, shape index: {}]
  %s10 = inlined_call_operand.vmem [shape: f32[1,32], index: 10, kind: input, shape index: {}]
  %s11 = inlined_call_operand.vmem [shape: s32[2,8,8], index: 11, kind: input, shape index: {}]
  %s12 = inlined_call_operand.hbm [shape: f32[16,32], index: 12, kind: output, shape index: {0}]
  %s13 = inlined_call_operand.hbm [shape: f32[2,4,8,8], index: 13, kind: output, shape index: {1}]
  %14 = xla_tuple %s12, %s13
  %s15 = sld [smem:[#allocation0]]
  $region66: #{mha_forward.1} parent=0
    _
  %s17 = ssub.s32 1, %s15
  %s18 = scalar_select 0, %s17, %s15
  $region1: #{mha_forward.1} parent=0
    #allocation2 [shape = 'u8[8192]{0}', space=vmem, size = 0x2000, scoped, tag = 'output window, operand 0, single buffered']
    #allocation3 [shape = 's32[1]{0}', space=sflag, size = 0x4, scoped, tag = 'scoped memory for mha_forward.1']
    #allocation4 [shape = 'u8[32768]{0}', space=vmem, size = 0x8000, scoped, tag = 'output window, operand 1, single buffered']
    #allocation5 [shape = 's32[1]{0}', space=sflag, size = 0x4, scoped, tag = 'scoped memory for mha_forward.1']
    %19 = vsyncpa [#allocation3], 0
    %20 = vsyncpa [#allocation5], 0
    // Predicated region
    $region2: #{mha_forward.1} parent=1 // pred_check
      _
    $region3: #{mha_forward.1} parent=1 // pred_check_branch
      %22 = sbr.rel (0) target = $region5
    $region4: #{mha_forward.1} parent=1 // pred_region
      _
    $region5: #{mha_forward.1} parent=1 // pred_fallthru
      _
    // Predicated region
    $region6: #{mha_forward.1} parent=1 // pred_check
      _
    $region7: #{mha_forward.1} parent=1 // pred_check_branch
      %24 = sbr.rel (0) target = $region9
    $region8: #{mha_forward.1} parent=1 // pred_region
      _
    $region9: #{mha_forward.1} parent=1 // pred_fallthru
      _
    // Predicated region
    $region10: #{mha_forward.1} parent=1 // pred_check
      _
    $region11: #{mha_forward.1} parent=1 // pred_check_branch
      %26 = sbr.rel (0) target = $region13
    $region12: #{mha_forward.1} parent=1 // pred_region
      _
    $region13: #{mha_forward.1} parent=1 // pred_fallthru
      _
    // Predicated region
    $region14: #{mha_forward.1} parent=1 // pred_check
      _
    $region15: #{mha_forward.1} parent=1 // pred_check_branch
      %28 = sbr.rel (0) target = $region17
    $region16: #{mha_forward.1} parent=1 // pred_region
      _
    $region17: #{mha_forward.1} parent=1 // pred_fallthru
      _
    // Predicated region
    $region18: #{mha_forward.1} parent=1 // pred_check
      _
    $region19: #{mha_forward.1} parent=1 // pred_check_branch
      %30 = sbr.rel (0) target = $region21
    $region20: #{mha_forward.1} parent=1 // pred_region
      _
    $region21: #{mha_forward.1} parent=1 // pred_fallthru
      _
    // Predicated region
    $region22: #{mha_forward.1} parent=1 // pred_check
      _
    $region23: #{mha_forward.1} parent=1 // pred_check_branch
      %32 = sbr.rel (0) target = $region25
    $region24: #{mha_forward.1} parent=1 // pred_region
      _
    $region25: #{mha_forward.1} parent=1 // pred_fallthru
      _
    // Predicated region
    $region26: #{mha_forward.1} parent=1 // pred_check
      _
    $region27: #{mha_forward.1} parent=1 // pred_check_branch
      %34 = sbr.rel (0) target = $region29
    $region28: #{mha_forward.1} parent=1 // pred_region
      _
    $region29: #{mha_forward.1} parent=1 // pred_fallthru
      _
    // Predicated region
    $region30: #{mha_forward.1} parent=1 // pred_check
      _
    $region31: #{mha_forward.1} parent=1 // pred_check_branch
      %36 = sbr.rel (0) target = $region33
    $region32: #{mha_forward.1} parent=1 // pred_region
      _
    $region33: #{mha_forward.1} parent=1 // pred_fallthru
      _
    // Predicated region
    $region34: #{mha_forward.1} parent=1 // pred_check
      _
    $region35: #{mha_forward.1} parent=1 // pred_check_branch
      %38 = sbr.rel (0) target = $region37
    $region36: #{mha_forward.1} parent=1 // pred_region
      _
    $region37: #{mha_forward.1} parent=1 // pred_fallthru
      _
    // Predicated region
    $region38: #{mha_forward.1} parent=1 // pred_check
      _
    $region39: #{mha_forward.1} parent=1 // pred_check_branch
      %40 = sbr.rel (0) target = $region41
    $region40: #{mha_forward.1} parent=1 // pred_region
      _
    $region41: #{mha_forward.1} parent=1 // pred_fallthru
      _
    // Predicated region
    $region42: #{mha_forward.1} parent=1 // pred_check
      _
    $region43: #{mha_forward.1} parent=1 // pred_check_branch
      %42 = sbr.rel (0) target = $region45
    $region44: #{mha_forward.1} parent=1 // pred_region
      _
    $region45: #{mha_forward.1} parent=1 // pred_fallthru
      _
    // Predicated region
    $region46: #{mha_forward.1} parent=1 // pred_check
      _
    $region47: #{mha_forward.1} parent=1 // pred_check_branch
      %44 = sbr.rel (0) target = $region49
    $region48: #{mha_forward.1} parent=1 // pred_region
      _
    $region49: #{mha_forward.1} parent=1 // pred_fallthru
      _
    %v46 = vld [vmem:[%s0] sm:$0xf]
    %v47 = vld [vmem:[%s0 + $0x4] sm:$0xf]
    %v48 = vld [vmem:[%s3] sm:$0xf]
    %v49 = vld [vmem:[%s3 + $0x4] sm:$0xf]
    %v50 = vld [vmem:[%s3 + $0x8] sm:$0xf]
    %v51 = vld [vmem:[%s3 + $0xc] sm:$0xf]
    %v52 = vld [vmem:[%s7] sm:$0x1]
    %v54 = vlaneseq
    %v55 = vshrl.u32 %v54, 7
    %v56 = vsub.s32 0, %v55
    %v57 = vrot.slane %v52, %v56
    %v61 = vunpack.c.l.b16 %v46
    %v62 = vunpack.c.l.b16 %v47
    %v63 = vpack.c.b16 %v62, %v61
    %v68 = vunpack.c.l.b16 %v48
    %v69 = vunpack.c.l.b16 %v49
    %v70 = vunpack.c.l.b16 %v50
    %v71 = vunpack.c.l.b16 %v51
    %v72 = vpack.c.b16 %v69, %v68
    %v73 = vpack.c.b16 %v71, %v70
    %vm76 = vcmask 261120
    %v78 = vsel %vm76, %v63, 0
    %80 = vmatprep.subr.bf16.mxu0 0
    %81 = vmatpush1.bf16.msra.mxu0 %v72
    %82 = vmatprep.subr.bf16.mxu0 0
    %83 = vmatpush1.bf16.msra.mxu0 %v73
    %84 = vmatprep.subr.bf16.mxu0 0
    %85 = vmatpush1.bf16.msra.mxu0 0
    %86 = vmatprep.subr.bf16.mxu0 0
    %87 = vmatpush1.bf16.msra.mxu0 0
    %88 = vmatprep.subr.bf16.mxu0 0
    %89 = vmatpush1.bf16.msra.mxu0 0
    %90 = vmatprep.subr.bf16.mxu0 0
    %91 = vmatpush1.bf16.msra.mxu0 0
    %92 = vmatprep.subr.bf16.mxu0 0
    %93 = vmatpush1.bf16.msra.mxu0 0
    %94 = vmatprep.subr.bf16.mxu0 0
    %95 = vmatpush1.bf16.msra.mxu0 0
    %96 = vmatprep.subr.bf16.mxu0 0
    %97 = vmatpush1.bf16.msra.mxu0 0
    %98 = vmatprep.subr.bf16.mxu0 0
    %99 = vmatpush1.bf16.msra.mxu0 0
    %100 = vmatprep.subr.bf16.mxu0 0
    %101 = vmatpush1.bf16.msra.mxu0 0
    %102 = vmatprep.subr.bf16.mxu0 0
    %103 = vmatpush1.bf16.msra.mxu0 0
    %104 = vmatprep.subr.bf16.mxu0 0
    %105 = vmatpush1.bf16.msra.mxu0 0
    %106 = vmatprep.subr.bf16.mxu0 0
    %107 = vmatpush1.bf16.msra.mxu0 0
    %108 = vmatprep.subr.bf16.mxu0 0
    %109 = vmatpush1.bf16.msra.mxu0 0
    %110 = vmatprep.subr.bf16.mxu0 0
    %111 = vmatpush1.bf16.msra.mxu0 0
    %112 = vmatprep.mubr.bf16.mxu0 0
    %113 = vmatmul.mubr.bf16.gmra.mrb[0].mxu0 %v78
    %v114 = vpop.f32.mrb[0].mxu0
    %v115 = vadd.f32 %v57, %v114
    %v116 = vpop.f32.mrb[0].mxu0
    %v117 = vpop.f32.mrb[0].mxu0
    %v118 = vadd.f32 %v57, %v117
    %v119 = vpop.f32.mrb[0].mxu0
    %120 = vdwg.mxu0
    %v121 = vld [vmem:[%s1] sm:$0xf]
    %v122 = vld [vmem:[%s1 + $0x4] sm:$0xf]
    %v123 = vld [vmem:[%s4] sm:$0xf]
    %v124 = vld [vmem:[%s4 + $0x4] sm:$0xf]
    %v125 = vld [vmem:[%s4 + $0x8] sm:$0xf]
    %v126 = vld [vmem:[%s4 + $0xc] sm:$0xf]
    %v127 = vld [vmem:[%s8] sm:$0x1]
    %v129 = vlaneseq
    %v130 = vshrl.u32 %v129, 7
    %v131 = vsub.s32 0, %v130
    %v132 = vrot.slane %v127, %v131
    %v136 = vunpack.c.l.b16 %v121
    %v137 = vunpack.c.l.b16 %v122
    %v138 = vpack.c.b16 %v137, %v136
    %v143 = vunpack.c.l.b16 %v123
    %v144 = vunpack.c.l.b16 %v124
    %v145 = vunpack.c.l.b16 %v125
    %v146 = vunpack.c.l.b16 %v126
    %v147 = vpack.c.b16 %v144, %v143
    %v148 = vpack.c.b16 %v146, %v145
    %v152 = vsel %vm76, %v138, 0
    %154 = vmatprep.subr.bf16.mxu0 0
    %155 = vmatpush1.bf16.msra.mxu0 %v147
    %156 = vmatprep.subr.bf16.mxu0 0
    %157 = vmatpush1.bf16.msra.mxu0 %v148
    %158 = vmatprep.subr.bf16.mxu0 0
    %159 = vmatpush1.bf16.msra.mxu0 0
    %160 = vmatprep.subr.bf16.mxu0 0
    %161 = vmatpush1.bf16.msra.mxu0 0
    %162 = vmatprep.subr.bf16.mxu0 0
    %163 = vmatpush1.bf16.msra.mxu0 0
    %164 = vmatprep.subr.bf16.mxu0 0
    %165 = vmatpush1.bf16.msra.mxu0 0
    %166 = vmatprep.subr.bf16.mxu0 0
    %167 = vmatpush1.bf16.msra.mxu0 0
    %168 = vmatprep.subr.bf16.mxu0 0
    %169 = vmatpush1.bf16.msra.mxu0 0
    %170 = vmatprep.subr.bf16.mxu0 0
    %171 = vmatpush1.bf16.msra.mxu0 0
    %172 = vmatprep.subr.bf16.mxu0 0
    %173 = vmatpush1.bf16.msra.mxu0 0
    %174 = vmatprep.subr.bf16.mxu0 0
    %175 = vmatpush1.bf16.msra.mxu0 0
    %176 = vmatprep.subr.bf16.mxu0 0
    %177 = vmatpush1.bf16.msra.mxu0 0
    %178 = vmatprep.subr.bf16.mxu0 0
    %179 = vmatpush1.bf16.msra.mxu0 0
    %180 = vmatprep.subr.bf16.mxu0 0
    %181 = vmatpush1.bf16.msra.mxu0 0
    %182 = vmatprep.subr.bf16.mxu0 0
    %183 = vmatpush1.bf16.msra.mxu0 0
    %184 = vmatprep.subr.bf16.mxu0 0
    %185 = vmatpush1.bf16.msra.mxu0 0
    %186 = vmatprep.mubr.bf16.mxu0 0
    %187 = vmatmul.mubr.bf16.gmra.mrb[0].mxu0 %v152
    %v188 = vpop.f32.mrb[0].mxu0
    %v189 = vadd.f32 %v132, %v188
    %v190 = vpop.f32.mrb[0].mxu0
    %v191 = vpop.f32.mrb[0].mxu0
    %v192 = vadd.f32 %v132, %v191
    %v193 = vpop.f32.mrb[0].mxu0
    %194 = vdwg.mxu0
    %v195 = vld [vmem:[%s2] sm:$0xf]
    %v196 = vld [vmem:[%s2 + $0x4] sm:$0xf]
    %v197 = vld [vmem:[%s5] sm:$0xf]
    %v198 = vld [vmem:[%s5 + $0x4] sm:$0xf]
    %v199 = vld [vmem:[%s5 + $0x8] sm:$0xf]
    %v200 = vld [vmem:[%s5 + $0xc] sm:$0xf]
    %v201 = vld [vmem:[%s9] sm:$0x1]
    %v203 = vlaneseq
    %v204 = vshrl.u32 %v203, 7
    %v205 = vsub.s32 0, %v204
    %v206 = vrot.slane %v201, %v205
    %v210 = vunpack.c.l.b16 %v195
    %v211 = vunpack.c.l.b16 %v196
    %v212 = vpack.c.b16 %v211, %v210
    %v217 = vunpack.c.l.b16 %v197
    %v218 = vunpack.c.l.b16 %v198
    %v219 = vunpack.c.l.b16 %v199
    %v220 = vunpack.c.l.b16 %v200
    %v221 = vpack.c.b16 %v218, %v217
    %v222 = vpack.c.b16 %v220, %v219
    %v226 = vsel %vm76, %v212, 0
    %228 = vmatprep.subr.bf16.mxu0 0
    %229 = vmatpush1.bf16.msra.mxu0 %v221
    %230 = vmatprep.subr.bf16.mxu0 0
    %231 = vmatpush1.bf16.msra.mxu0 %v222
    %232 = vmatprep.subr.bf16.mxu0 0
    %233 = vmatpush1.bf16.msra.mxu0 0
    %234 = vmatprep.subr.bf16.mxu0 0
    %235 = vmatpush1.bf16.msra.mxu0 0
    %236 = vmatprep.subr.bf16.mxu0 0
    %237 = vmatpush1.bf16.msra.mxu0 0
    %238 = vmatprep.subr.bf16.mxu0 0
    %239 = vmatpush1.bf16.msra.mxu0 0
    %240 = vmatprep.subr.bf16.mxu0 0
    %241 = vmatpush1.bf16.msra.mxu0 0
    %242 = vmatprep.subr.bf16.mxu0 0
    %243 = vmatpush1.bf16.msra.mxu0 0
    %244 = vmatprep.subr.bf16.mxu0 0
    %245 = vmatpush1.bf16.msra.mxu0 0
    %246 = vmatprep.subr.bf16.mxu0 0
    %247 = vmatpush1.bf16.msra.mxu0 0
    %248 = vmatprep.subr.bf16.mxu0 0
    %249 = vmatpush1.bf16.msra.mxu0 0
    %250 = vmatprep.subr.bf16.mxu0 0
    %251 = vmatpush1.bf16.msra.mxu0 0
    %252 = vmatprep.subr.bf16.mxu0 0
    %253 = vmatpush1.bf16.msra.mxu0 0
    %254 = vmatprep.subr.bf16.mxu0 0
    %255 = vmatpush1.bf16.msra.mxu0 0
    %256 = vmatprep.subr.bf16.mxu0 0
    %257 = vmatpush1.bf16.msra.mxu0 0
    %258 = vmatprep.subr.bf16.mxu0 0
    %259 = vmatpush1.bf16.msra.mxu0 0
    %260 = vmatprep.mubr.bf16.mxu0 0
    %261 = vmatmul.mubr.bf16.gmra.mrb[0].mxu0 %v226
    %v262 = vpop.f32.mrb[0].mxu0
    %v263 = vadd.f32 %v206, %v262
    %v264 = vpop.f32.mrb[0].mxu0
    %v265 = vpop.f32.mrb[0].mxu0
    %v266 = vadd.f32 %v206, %v265
    %v267 = vpop.f32.mrb[0].mxu0
    %268 = vdwg.mxu0
    %v269 = vpack.c.bf16 %v118, %v115
    %v270 = vpack.c.bf16 %v192, %v189
    %v271 = vpack.c.bf16 %v266, %v263
    %v272 = vld [vmem:[%s6] sm:$0xf]
    %v273 = vld [vmem:[%s6 + $0x4] sm:$0xf]
    %v274 = vld [vmem:[%s6 + $0x8] sm:$0xf]
    %v275 = vld [vmem:[%s6 + $0xc] sm:$0xf]
    %v276 = vld [vmem:[%s10] sm:$0x1]
    %v277 = vld [vmem:[%s11] sm:$0xff]
    %vm278 = vcmp.gt.s32.totalorder %v277, 0
    %vm279 = vcmask 64512
    %v281 = vsel %vm279, %v269, 0
    %v284 = vsel %vm279, %v270, 0
    %286 = vmatprep.subr.bf16.mxu0 0
    %287 = vmatpush1.bf16.xpose.msra.mxu0 %v284
    %288 = vmatprep.subr.bf16.mxu0 0
    %289 = vmatpush1.bf16.xpose.msra.mxu0 0
    %290 = vmatprep.subr.bf16.mxu0 0
    %291 = vmatpush1.bf16.xpose.msra.mxu0 0
    %292 = vmatprep.subr.bf16.mxu0 0
    %293 = vmatpush1.bf16.xpose.msra.mxu0 0
    %294 = vmatprep.subr.bf16.mxu0 0
    %295 = vmatpush1.bf16.xpose.msra.mxu0 0
    %296 = vmatprep.subr.bf16.mxu0 0
    %297 = vmatpush1.bf16.xpose.msra.mxu0 0
    %298 = vmatprep.subr.bf16.mxu0 0
    %299 = vmatpush1.bf16.xpose.msra.mxu0 0
    %300 = vmatprep.subr.bf16.mxu0 0
    %301 = vmatpush1.bf16.xpose.msra.mxu0 0
    %302 = vmatprep.subr.bf16.mxu0 0
    %303 = vmatpush1.bf16.xpose.msra.mxu0 0
    %304 = vmatprep.subr.bf16.mxu0 0
    %305 = vmatpush1.bf16.xpose.msra.mxu0 0
    %306 = vmatprep.subr.bf16.mxu0 0
    %307 = vmatpush1.bf16.xpose.msra.mxu0 0
    %308 = vmatprep.subr.bf16.mxu0 0
    %309 = vmatpush1.bf16.xpose.msra.mxu0 0
    %310 = vmatprep.subr.bf16.mxu0 0
    %311 = vmatpush1.bf16.xpose.msra.mxu0 0
    %312 = vmatprep.subr.bf16.mxu0 0
    %313 = vmatpush1.bf16.xpose.msra.mxu0 0
    %314 = vmatprep.subr.bf16.mxu0 0
    %315 = vmatpush1.bf16.xpose.msra.mxu0 0
    %316 = vmatprep.subr.bf16.mxu0 0
    %317 = vmatpush1.bf16.xpose.msra.mxu0 0
    %318 = vmatprep.mubr.bf16.mxu0 0
    %319 = vmatmul.mubr.bf16.gmra.mrb[0].mxu0 %v281
    %v320 = vpop.f32.mrb[0].mxu0
    %v321 = vadd.f32 0.0, %v320
    %v322 = vpop.f32.mrb[0].mxu0
    %v323 = vpop.f32.mrb[0].mxu0
    %v324 = vpop.f32.mrb[0].mxu0
    %325 = vdwg.mxu0
    %v326 = vsel %vm278, -1e+10, %v321
    %v327 = vsel %vm279, %v326, -inf
    %328 = vmax.xlane.f32.xlu0 %v327
    %v329 = vpop.xlane.xlu0 %328
    %v330 = vsub.f32 %v326, %v329
    %v331 = vmul.f32 %v330, 1.442695
    %v332 = vpow.pop %v331
    %v333 = vsel %vm279, %v332, 0.0
    %334 = vadd.xlane.f32.xlu0 %v333
    %v335 = vpop.xlane.xlu0 %334
    %v336 = vrcp.pop %v335
    %v337 = vmul.f32 %v332, %v336
    %338 = vst.msk [vmem:[#allocation4] sm:$0xff] %vm279, %v337
    %v339 = vpack.c.bf16 %v337, %v337
    %v341 = vsel %vm279, %v339, 0
    %vm343 = vcmask 1043456
    %v345 = vsel %vm343, %v271, 0
    %347 = vmatprep.subr.bf16.mxu0 0
    %348 = vmatpush1.bf16.msra.mxu0 %v345
    %349 = vmatprep.subr.bf16.mxu0 0
    %350 = vmatpush1.bf16.msra.mxu0 0
    %351 = vmatprep.subr.bf16.mxu0 0
    %352 = vmatpush1.bf16.msra.mxu0 0
    %353 = vmatprep.subr.bf16.mxu0 0
    %354 = vmatpush1.bf16.msra.mxu0 0
    %355 = vmatprep.subr.bf16.mxu0 0
    %356 = vmatpush1.bf16.msra.mxu0 0
    %357 = vmatprep.subr.bf16.mxu0 0
    %358 = vmatpush1.bf16.msra.mxu0 0
    %359 = vmatprep.subr.bf16.mxu0 0
    %360 = vmatpush1.bf16.msra.mxu0 0
    %361 = vmatprep.subr.bf16.mxu0 0
    %362 = vmatpush1.bf16.msra.mxu0 0
    %363 = vmatprep.subr.bf16.mxu0 0
    %364 = vmatpush1.bf16.msra.mxu0 0
    %365 = vmatprep.subr.bf16.mxu0 0
    %366 = vmatpush1.bf16.msra.mxu0 0
    %367 = vmatprep.subr.bf16.mxu0 0
    %368 = vmatpush1.bf16.msra.mxu0 0
    %369 = vmatprep.subr.bf16.mxu0 0
    %370 = vmatpush1.bf16.msra.mxu0 0
    %371 = vmatprep.subr.bf16.mxu0 0
    %372 = vmatpush1.bf16.msra.mxu0 0
    %373 = vmatprep.subr.bf16.mxu0 0
    %374 = vmatpush1.bf16.msra.mxu0 0
    %375 = vmatprep.subr.bf16.mxu0 0
    %376 = vmatpush1.bf16.msra.mxu0 0
    %377 = vmatprep.subr.bf16.mxu0 0
    %378 = vmatpush1.bf16.msra.mxu0 0
    %379 = vmatprep.mubr.bf16.mxu0 0
    %380 = vmatmul.mubr.bf16.gmra.mrb[0].mxu0 %v341
    %v381 = vpop.f32.mrb[0].mxu0
    %v382 = vadd.f32 0.0, %v381
    %v383 = vpop.f32.mrb[0].mxu0
    %v384 = vpop.f32.mrb[0].mxu0
    %v385 = vpop.f32.mrb[0].mxu0
    %386 = vdwg.mxu0
    %v387 = vpack.c.bf16 %v382, %v382
    %389 = vrot.lane.b32.xlu0 %v269, 120
    %v390 = vpop.permute.xlu0 %389
    %392 = vrot.lane.b32.xlu0 %v270, 120
    %v393 = vpop.permute.xlu0 %392
    %v395 = vsel %vm279, %v390, 0
    %v398 = vsel %vm279, %v393, 0
    %400 = vmatprep.subr.bf16.mxu0 0
    %401 = vmatpush1.bf16.xpose.msra.mxu0 %v398
    %402 = vmatprep.subr.bf16.mxu0 0
    %403 = vmatpush1.bf16.xpose.msra.mxu0 0
    %404 = vmatprep.subr.bf16.mxu0 0
    %405 = vmatpush1.bf16.xpose.msra.mxu0 0
    %406 = vmatprep.subr.bf16.mxu0 0
    %407 = vmatpush1.bf16.xpose.msra.mxu0 0
    %408 = vmatprep.subr.bf16.mxu0 0
    %409 = vmatpush1.bf16.xpose.msra.mxu0 0
    %410 = vmatprep.subr.bf16.mxu0 0
    %411 = vmatpush1.bf16.xpose.msra.mxu0 0
    %412 = vmatprep.subr.bf16.mxu0 0
    %413 = vmatpush1.bf16.xpose.msra.mxu0 0
    %414 = vmatprep.subr.bf16.mxu0 0
    %415 = vmatpush1.bf16.xpose.msra.mxu0 0
    %416 = vmatprep.subr.bf16.mxu0 0
    %417 = vmatpush1.bf16.xpose.msra.mxu0 0
    %418 = vmatprep.subr.bf16.mxu0 0
    %419 = vmatpush1.bf16.xpose.msra.mxu0 0
    %420 = vmatprep.subr.bf16.mxu0 0
    %421 = vmatpush1.bf16.xpose.msra.mxu0 0
    %422 = vmatprep.subr.bf16.mxu0 0
    %423 = vmatpush1.bf16.xpose.msra.mxu0 0
    %424 = vmatprep.subr.bf16.mxu0 0
    %425 = vmatpush1.bf16.xpose.msra.mxu0 0
    %426 = vmatprep.subr.bf16.mxu0 0
    %427 = vmatpush1.bf16.xpose.msra.mxu0 0
    %428 = vmatprep.subr.bf16.mxu0 0
    %429 = vmatpush1.bf16.xpose.msra.mxu0 0
    %430 = vmatprep.subr.bf16.mxu0 0
    %431 = vmatpush1.bf16.xpose.msra.mxu0 0
    %432 = vmatprep.mubr.bf16.mxu0 0
    %433 = vmatmul.mubr.bf16.gmra.mrb[0].mxu0 %v395
    %v434 = vpop.f32.mrb[0].mxu0
    %v435 = vadd.f32 0.0, %v434
    %v436 = vpop.f32.mrb[0].mxu0
    %v437 = vpop.f32.mrb[0].mxu0
    %v438 = vpop.f32.mrb[0].mxu0
    %439 = vdwg.mxu0
    %v440 = vsel %vm278, -1e+10, %v435
    %v441 = vsel %vm279, %v440, -inf
    %442 = vmax.xlane.f32.xlu0 %v441
    %v443 = vpop.xlane.xlu0 %442
    %v444 = vsub.f32 %v440, %v443
    %v445 = vmul.f32 %v444, 1.442695
    %v446 = vpow.pop %v445
    %v447 = vsel %vm279, %v446, 0.0
    %448 = vadd.xlane.f32.xlu0 %v447
    %v449 = vpop.xlane.xlu0 %448
    %v450 = vrcp.pop %v449
    %v451 = vmul.f32 %v446, %v450
    %s452 = scalar_lea.vmem [#allocation4], 8
    %453 = vst.msk [vmem:[%s452] sm:$0xff] %vm279, %v451
    %v454 = vpack.c.bf16 %v451, %v451
    %456 = vrot.lane.b32.xlu0 %v271, 120
    %v457 = vpop.permute.xlu0 %456
    %v459 = vsel %vm279, %v454, 0
    %v462 = vsel %vm343, %v457, 0
    %464 = vmatprep.subr.bf16.mxu0 0
    %465 = vmatpush1.bf16.msra.mxu0 %v462
    %466 = vmatprep.subr.bf16.mxu0 0
    %467 = vmatpush1.bf16.msra.mxu0 0
    %468 = vmatprep.subr.bf16.mxu0 0
    %469 = vmatpush1.bf16.msra.mxu0 0
    %470 = vmatprep.subr.bf16.mxu0 0
    %471 = vmatpush1.bf16.msra.mxu0 0
    %472 = vmatprep.subr.bf16.mxu0 0
    %473 = vmatpush1.bf16.msra.mxu0 0
    %474 = vmatprep.subr.bf16.mxu0 0
    %475 = vmatpush1.bf16.msra.mxu0 0
    %476 = vmatprep.subr.bf16.mxu0 0
    %477 = vmatpush1.bf16.msra.mxu0 0
    %478 = vmatprep.subr.bf16.mxu0 0
    %479 = vmatpush1.bf16.msra.mxu0 0
    %480 = vmatprep.subr.bf16.mxu0 0
    %481 = vmatpush1.bf16.msra.mxu0 0
    %482 = vmatprep.subr.bf16.mxu0 0
    %483 = vmatpush1.bf16.msra.mxu0 0
    %484 = vmatprep.subr.bf16.mxu0 0
    %485 = vmatpush1.bf16.msra.mxu0 0
    %486 = vmatprep.subr.bf16.mxu0 0
    %487 = vmatpush1.bf16.msra.mxu0 0
    %488 = vmatprep.subr.bf16.mxu0 0
    %489 = vmatpush1.bf16.msra.mxu0 0
    %490 = vmatprep.subr.bf16.mxu0 0
    %491 = vmatpush1.bf16.msra.mxu0 0
    %492 = vmatprep.subr.bf16.mxu0 0
    %493 = vmatpush1.bf16.msra.mxu0 0
    %494 = vmatprep.subr.bf16.mxu0 0
    %495 = vmatpush1.bf16.msra.mxu0 0
    %496 = vmatprep.mubr.bf16.mxu0 0
    %497 = vmatmul.mubr.bf16.gmra.mrb[0].mxu0 %v459
    %v498 = vpop.f32.mrb[0].mxu0
    %v499 = vadd.f32 0.0, %v498
    %v500 = vpop.f32.mrb[0].mxu0
    %v501 = vpop.f32.mrb[0].mxu0
    %v502 = vpop.f32.mrb[0].mxu0
    %503 = vdwg.mxu0
    %v504 = vpack.c.bf16 %v499, %v499
    %v506 = vsel %vm279, %v504, 0
    %v509 = vsel %vm343, %v273, 0
    %511 = vmatprep.subr.bf16.mxu0 0
    %512 = vmatpush1.bf16.msra.mxu0 %v509
    %513 = vmatprep.subr.bf16.mxu0 0
    %514 = vmatpush1.bf16.msra.mxu0 0
    %515 = vmatprep.subr.bf16.mxu0 0
    %516 = vmatpush1.bf16.msra.mxu0 0
    %517 = vmatprep.subr.bf16.mxu0 0
    %518 = vmatpush1.bf16.msra.mxu0 0
    %519 = vmatprep.subr.bf16.mxu0 0
    %520 = vmatpush1.bf16.msra.mxu0 0
    %521 = vmatprep.subr.bf16.mxu0 0
    %522 = vmatpush1.bf16.msra.mxu0 0
    %523 = vmatprep.subr.bf16.mxu0 0
    %524 = vmatpush1.bf16.msra.mxu0 0
    %525 = vmatprep.subr.bf16.mxu0 0
    %526 = vmatpush1.bf16.msra.mxu0 0
    %527 = vmatprep.subr.bf16.mxu0 0
    %528 = vmatpush1.bf16.msra.mxu0 0
    %529 = vmatprep.subr.bf16.mxu0 0
    %530 = vmatpush1.bf16.msra.mxu0 0
    %531 = vmatprep.subr.bf16.mxu0 0
    %532 = vmatpush1.bf16.msra.mxu0 0
    %533 = vmatprep.subr.bf16.mxu0 0
    %534 = vmatpush1.bf16.msra.mxu0 0
    %535 = vmatprep.subr.bf16.mxu0 0
    %536 = vmatpush1.bf16.msra.mxu0 0
    %537 = vmatprep.subr.bf16.mxu0 0
    %538 = vmatpush1.bf16.msra.mxu0 0
    %539 = vmatprep.subr.bf16.mxu0 0
    %540 = vmatpush1.bf16.msra.mxu0 0
    %541 = vmatprep.subr.bf16.mxu0 0
    %542 = vmatpush1.bf16.msra.mxu0 0
    %543 = vmatprep.mubr.bf16.mxu0 0
    %544 = vmatmul.mubr.bf16.gmra.mrb[0].mxu0 %v506
    %v545 = vpop.f32.mrb[0].mxu0
    %v546 = vadd.f32 0.0, %v545
    %v547 = vpop.f32.mrb[0].mxu0
    %v548 = vpop.f32.mrb[0].mxu0
    %v549 = vpop.f32.mrb[0].mxu0
    %550 = vdwg.mxu0
    %v552 = vsel %vm279, %v387, 0
    %v555 = vsel %vm343, %v272, 0
    %557 = vmatprep.subr.bf16.mxu0 0
    %558 = vmatpush1.bf16.msra.mxu0 %v555
    %559 = vmatprep.subr.bf16.mxu0 0
    %560 = vmatpush1.bf16.msra.mxu0 0
    %561 = vmatprep.subr.bf16.mxu0 0
    %562 = vmatpush1.bf16.msra.mxu0 0
    %563 = vmatprep.subr.bf16.mxu0 0
    %564 = vmatpush1.bf16.msra.mxu0 0
    %565 = vmatprep.subr.bf16.mxu0 0
    %566 = vmatpush1.bf16.msra.mxu0 0
    %567 = vmatprep.subr.bf16.mxu0 0
    %568 = vmatpush1.bf16.msra.mxu0 0
    %569 = vmatprep.subr.bf16.mxu0 0
    %570 = vmatpush1.bf16.msra.mxu0 0
    %571 = vmatprep.subr.bf16.mxu0 0
    %572 = vmatpush1.bf16.msra.mxu0 0
    %573 = vmatprep.subr.bf16.mxu0 0
    %574 = vmatpush1.bf16.msra.mxu0 0
    %575 = vmatprep.subr.bf16.mxu0 0
    %576 = vmatpush1.bf16.msra.mxu0 0
    %577 = vmatprep.subr.bf16.mxu0 0
    %578 = vmatpush1.bf16.msra.mxu0 0
    %579 = vmatprep.subr.bf16.mxu0 0
    %580 = vmatpush1.bf16.msra.mxu0 0
    %581 = vmatprep.subr.bf16.mxu0 0
    %582 = vmatpush1.bf16.msra.mxu0 0
    %583 = vmatprep.subr.bf16.mxu0 0
    %584 = vmatpush1.bf16.msra.mxu0 0
    %585 = vmatprep.subr.bf16.mxu0 0
    %586 = vmatpush1.bf16.msra.mxu0 0
    %587 = vmatprep.subr.bf16.mxu0 0
    %588 = vmatpush1.bf16.msra.mxu0 0
    %589 = vmatprep.mubr.bf16.mxu0 0
    %590 = vmatmul.mubr.bf16.gmra.mrb[0].mxu0 %v552
    %v591 = vpop.f32.mrb[0].mxu0
    %v592 = vadd.f32 %v546, %v591
    %v593 = vpop.f32.mrb[0].mxu0
    %v594 = vpop.f32.mrb[0].mxu0
    %v595 = vpop.f32.mrb[0].mxu0
    %596 = vdwg.mxu0
    %597 = vrot.lane.b32.xlu0 %v269, 112
    %v598 = vpop.permute.xlu0 %597
    %599 = vrot.lane.b32.xlu0 %v270, 112
    %v600 = vpop.permute.xlu0 %599
    %v602 = vsel %vm279, %v598, 0
    %v605 = vsel %vm279, %v600, 0
    %607 = vmatprep.subr.bf16.mxu0 0
    %608 = vmatpush1.bf16.xpose.msra.mxu0 %v605
    %609 = vmatprep.subr.bf16.mxu0 0
    %610 = vmatpush1.bf16.xpose.msra.mxu0 0
    %611 = vmatprep.subr.bf16.mxu0 0
    %612 = vmatpush1.bf16.xpose.msra.mxu0 0
    %613 = vmatprep.subr.bf16.mxu0 0
    %614 = vmatpush1.bf16.xpose.msra.mxu0 0
    %615 = vmatprep.subr.bf16.mxu0 0
    %616 = vmatpush1.bf16.xpose.msra.mxu0 0
    %617 = vmatprep.subr.bf16.mxu0 0
    %618 = vmatpush1.bf16.xpose.msra.mxu0 0
    %619 = vmatprep.subr.bf16.mxu0 0
    %620 = vmatpush1.bf16.xpose.msra.mxu0 0
    %621 = vmatprep.subr.bf16.mxu0 0
    %622 = vmatpush1.bf16.xpose.msra.mxu0 0
    %623 = vmatprep.subr.bf16.mxu0 0
    %624 = vmatpush1.bf16.xpose.msra.mxu0 0
    %625 = vmatprep.subr.bf16.mxu0 0
    %626 = vmatpush1.bf16.xpose.msra.mxu0 0
    %627 = vmatprep.subr.bf16.mxu0 0
    %628 = vmatpush1.bf16.xpose.msra.mxu0 0
    %629 = vmatprep.subr.bf16.mxu0 0
    %630 = vmatpush1.bf16.xpose.msra.mxu0 0
    %631 = vmatprep.subr.bf16.mxu0 0
    %632 = vmatpush1.bf16.xpose.msra.mxu0 0
    %633 = vmatprep.subr.bf16.mxu0 0
    %634 = vmatpush1.bf16.xpose.msra.mxu0 0
    %635 = vmatprep.subr.bf16.mxu0 0
    %636 = vmatpush1.bf16.xpose.msra.mxu0 0
    %637 = vmatprep.subr.bf16.mxu0 0
    %638 = vmatpush1.bf16.xpose.msra.mxu0 0
    %639 = vmatprep.mubr.bf16.mxu0 0
    %640 = vmatmul.mubr.bf16.gmra.mrb[0].mxu0 %v602
    %v641 = vpop.f32.mrb[0].mxu0
    %v642 = vadd.f32 0.0, %v641
    %v643 = vpop.f32.mrb[0].mxu0
    %v644 = vpop.f32.mrb[0].mxu0
    %v645 = vpop.f32.mrb[0].mxu0
    %646 = vdwg.mxu0
    %v647 = vsel %vm278, -1e+10, %v642
    %v648 = vsel %vm279, %v647, -inf
    %649 = vmax.xlane.f32.xlu0 %v648
    %v650 = vpop.xlane.xlu0 %649
    %v651 = vsub.f32 %v647, %v650
    %v652 = vmul.f32 %v651, 1.442695
    %v653 = vpow.pop %v652
    %v654 = vsel %vm279, %v653, 0.0
    %655 = vadd.xlane.f32.xlu0 %v654
    %v656 = vpop.xlane.xlu0 %655
    %v657 = vrcp.pop %v656
    %v658 = vmul.f32 %v653, %v657
    %s659 = scalar_lea.vmem [#allocation4], 16
    %660 = vst.msk [vmem:[%s659] sm:$0xff] %vm279, %v658
    %v661 = vpack.c.bf16 %v658, %v658
    %662 = vrot.lane.b32.xlu0 %v271, 112
    %v663 = vpop.permute.xlu0 %662
    %v665 = vsel %vm279, %v661, 0
    %v668 = vsel %vm343, %v663, 0
    %670 = vmatprep.subr.bf16.mxu0 0
    %671 = vmatpush1.bf16.msra.mxu0 %v668
    %672 = vmatprep.subr.bf16.mxu0 0
    %673 = vmatpush1.bf16.msra.mxu0 0
    %674 = vmatprep.subr.bf16.mxu0 0
    %675 = vmatpush1.bf16.msra.mxu0 0
    %676 = vmatprep.subr.bf16.mxu0 0
    %677 = vmatpush1.bf16.msra.mxu0 0
    %678 = vmatprep.subr.bf16.mxu0 0
    %679 = vmatpush1.bf16.msra.mxu0 0
    %680 = vmatprep.subr.bf16.mxu0 0
    %681 = vmatpush1.bf16.msra.mxu0 0
    %682 = vmatprep.subr.bf16.mxu0 0
    %683 = vmatpush1.bf16.msra.mxu0 0
    %684 = vmatprep.subr.bf16.mxu0 0
    %685 = vmatpush1.bf16.msra.mxu0 0
    %686 = vmatprep.subr.bf16.mxu0 0
    %687 = vmatpush1.bf16.msra.mxu0 0
    %688 = vmatprep.subr.bf16.mxu0 0
    %689 = vmatpush1.bf16.msra.mxu0 0
    %690 = vmatprep.subr.bf16.mxu0 0
    %691 = vmatpush1.bf16.msra.mxu0 0
    %692 = vmatprep.subr.bf16.mxu0 0
    %693 = vmatpush1.bf16.msra.mxu0 0
    %694 = vmatprep.subr.bf16.mxu0 0
    %695 = vmatpush1.bf16.msra.mxu0 0
    %696 = vmatprep.subr.bf16.mxu0 0
    %697 = vmatpush1.bf16.msra.mxu0 0
    %698 = vmatprep.subr.bf16.mxu0 0
    %699 = vmatpush1.bf16.msra.mxu0 0
    %700 = vmatprep.subr.bf16.mxu0 0
    %701 = vmatpush1.bf16.msra.mxu0 0
    %702 = vmatprep.mubr.bf16.mxu0 0
    %703 = vmatmul.mubr.bf16.gmra.mrb[0].mxu0 %v665
    %v704 = vpop.f32.mrb[0].mxu0
    %v705 = vadd.f32 0.0, %v704
    %v706 = vpop.f32.mrb[0].mxu0
    %v707 = vpop.f32.mrb[0].mxu0
    %v708 = vpop.f32.mrb[0].mxu0
    %709 = vdwg.mxu0
    %v710 = vpack.c.bf16 %v705, %v705
    %v712 = vsel %vm279, %v710, 0
    %v715 = vsel %vm343, %v274, 0
    %717 = vmatprep.subr.bf16.mxu0 0
    %718 = vmatpush1.bf16.msra.mxu0 %v715
    %719 = vmatprep.subr.bf16.mxu0 0
    %720 = vmatpush1.bf16.msra.mxu0 0
    %721 = vmatprep.subr.bf16.mxu0 0
    %722 = vmatpush1.bf16.msra.mxu0 0
    %723 = vmatprep.subr.bf16.mxu0 0
    %724 = vmatpush1.bf16.msra.mxu0 0
    %725 = vmatprep.subr.bf16.mxu0 0
    %726 = vmatpush1.bf16.msra.mxu0 0
    %727 = vmatprep.subr.bf16.mxu0 0
    %728 = vmatpush1.bf16.msra.mxu0 0
    %729 = vmatprep.subr.bf16.mxu0 0
    %730 = vmatpush1.bf16.msra.mxu0 0
    %731 = vmatprep.subr.bf16.mxu0 0
    %732 = vmatpush1.bf16.msra.mxu0 0
    %733 = vmatprep.subr.bf16.mxu0 0
    %734 = vmatpush1.bf16.msra.mxu0 0
    %735 = vmatprep.subr.bf16.mxu0 0
    %736 = vmatpush1.bf16.msra.mxu0 0
    %737 = vmatprep.subr.bf16.mxu0 0
    %738 = vmatpush1.bf16.msra.mxu0 0
    %739 = vmatprep.subr.bf16.mxu0 0
    %740 = vmatpush1.bf16.msra.mxu0 0
    %741 = vmatprep.subr.bf16.mxu0 0
    %742 = vmatpush1.bf16.msra.mxu0 0
    %743 = vmatprep.subr.bf16.mxu0 0
    %744 = vmatpush1.bf16.msra.mxu0 0
    %745 = vmatprep.subr.bf16.mxu0 0
    %746 = vmatpush1.bf16.msra.mxu0 0
    %747 = vmatprep.subr.bf16.mxu0 0
    %748 = vmatpush1.bf16.msra.mxu0 0
    %749 = vmatprep.mubr.bf16.mxu0 0
    %750 = vmatmul.mubr.bf16.gmra.mrb[0].mxu0 %v712
    %v751 = vpop.f32.mrb[0].mxu0
    %v752 = vadd.f32 0.0, %v751
    %v753 = vpop.f32.mrb[0].mxu0
    %v754 = vpop.f32.mrb[0].mxu0
    %v755 = vpop.f32.mrb[0].mxu0
    %756 = vdwg.mxu0
    %v757 = vadd.f32 %v592, %v752
    %758 = vrot.lane.b32.xlu0 %v269, 104
    %v759 = vpop.permute.xlu0 %758
    %760 = vrot.lane.b32.xlu0 %v270, 104
    %v761 = vpop.permute.xlu0 %760
    %v763 = vsel %vm279, %v759, 0
    %v766 = vsel %vm279, %v761, 0
    %768 = vmatprep.subr.bf16.mxu0 0
    %769 = vmatpush1.bf16.xpose.msra.mxu0 %v766
    %770 = vmatprep.subr.bf16.mxu0 0
    %771 = vmatpush1.bf16.xpose.msra.mxu0 0
    %772 = vmatprep.subr.bf16.mxu0 0
    %773 = vmatpush1.bf16.xpose.msra.mxu0 0
    %774 = vmatprep.subr.bf16.mxu0 0
    %775 = vmatpush1.bf16.xpose.msra.mxu0 0
    %776 = vmatprep.subr.bf16.mxu0 0
    %777 = vmatpush1.bf16.xpose.msra.mxu0 0
    %778 = vmatprep.subr.bf16.mxu0 0
    %779 = vmatpush1.bf16.xpose.msra.mxu0 0
    %780 = vmatprep.subr.bf16.mxu0 0
    %781 = vmatpush1.bf16.xpose.msra.mxu0 0
    %782 = vmatprep.subr.bf16.mxu0 0
    %783 = vmatpush1.bf16.xpose.msra.mxu0 0
    %784 = vmatprep.subr.bf16.mxu0 0
    %785 = vmatpush1.bf16.xpose.msra.mxu0 0
    %786 = vmatprep.subr.bf16.mxu0 0
    %787 = vmatpush1.bf16.xpose.msra.mxu0 0
    %788 = vmatprep.subr.bf16.mxu0 0
    %789 = vmatpush1.bf16.xpose.msra.mxu0 0
    %790 = vmatprep.subr.bf16.mxu0 0
    %791 = vmatpush1.bf16.xpose.msra.mxu0 0
    %792 = vmatprep.subr.bf16.mxu0 0
    %793 = vmatpush1.bf16.xpose.msra.mxu0 0
    %794 = vmatprep.subr.bf16.mxu0 0
    %795 = vmatpush1.bf16.xpose.msra.mxu0 0
    %796 = vmatprep.subr.bf16.mxu0 0
    %797 = vmatpush1.bf16.xpose.msra.mxu0 0
    %798 = vmatprep.subr.bf16.mxu0 0
    %799 = vmatpush1.bf16.xpose.msra.mxu0 0
    %800 = vmatprep.mubr.bf16.mxu0 0
    %801 = vmatmul.mubr.bf16.gmra.mrb[0].mxu0 %v763
    %v802 = vpop.f32.mrb[0].mxu0
    %v803 = vadd.f32 0.0, %v802
    %v804 = vpop.f32.mrb[0].mxu0
    %v805 = vpop.f32.mrb[0].mxu0
    %v806 = vpop.f32.mrb[0].mxu0
    %807 = vdwg.mxu0
    %v808 = vsel %vm278, -1e+10, %v803
    %v809 = vsel %vm279, %v808, -inf
    %810 = vmax.xlane.f32.xlu0 %v809
    %v811 = vpop.xlane.xlu0 %810
    %v812 = vsub.f32 %v808, %v811
    %v813 = vmul.f32 %v812, 1.442695
    %v814 = vpow.pop %v813
    %v815 = vsel %vm279, %v814, 0.0
    %816 = vadd.xlane.f32.xlu0 %v815
    %v817 = vpop.xlane.xlu0 %816
    %v818 = vrcp.pop %v817
    %v819 = vmul.f32 %v814, %v818
    %s820 = scalar_lea.vmem [#allocation4], 24
    %821 = vst.msk [vmem:[%s820] sm:$0xff] %vm279, %v819
    %v822 = vpack.c.bf16 %v819, %v819
    %823 = vrot.lane.b32.xlu0 %v271, 104
    %v824 = vpop.permute.xlu0 %823
    %v826 = vsel %vm279, %v822, 0
    %v829 = vsel %vm343, %v824, 0
    %831 = vmatprep.subr.bf16.mxu0 0
    %832 = vmatpush1.bf16.msra.mxu0 %v829
    %833 = vmatprep.subr.bf16.mxu0 0
    %834 = vmatpush1.bf16.msra.mxu0 0
    %835 = vmatprep.subr.bf16.mxu0 0
    %836 = vmatpush1.bf16.msra.mxu0 0
    %837 = vmatprep.subr.bf16.mxu0 0
    %838 = vmatpush1.bf16.msra.mxu0 0
    %839 = vmatprep.subr.bf16.mxu0 0
    %840 = vmatpush1.bf16.msra.mxu0 0
    %841 = vmatprep.subr.bf16.mxu0 0
    %842 = vmatpush1.bf16.msra.mxu0 0
    %843 = vmatprep.subr.bf16.mxu0 0
    %844 = vmatpush1.bf16.msra.mxu0 0
    %845 = vmatprep.subr.bf16.mxu0 0
    %846 = vmatpush1.bf16.msra.mxu0 0
    %847 = vmatprep.subr.bf16.mxu0 0
    %848 = vmatpush1.bf16.msra.mxu0 0
    %849 = vmatprep.subr.bf16.mxu0 0
    %850 = vmatpush1.bf16.msra.mxu0 0
    %851 = vmatprep.subr.bf16.mxu0 0
    %852 = vmatpush1.bf16.msra.mxu0 0
    %853 = vmatprep.subr.bf16.mxu0 0
    %854 = vmatpush1.bf16.msra.mxu0 0
    %855 = vmatprep.subr.bf16.mxu0 0
    %856 = vmatpush1.bf16.msra.mxu0 0
    %857 = vmatprep.subr.bf16.mxu0 0
    %858 = vmatpush1.bf16.msra.mxu0 0
    %859 = vmatprep.subr.bf16.mxu0 0
    %860 = vmatpush1.bf16.msra.mxu0 0
    %861 = vmatprep.subr.bf16.mxu0 0
    %862 = vmatpush1.bf16.msra.mxu0 0
    %863 = vmatprep.mubr.bf16.mxu0 0
    %864 = vmatmul.mubr.bf16.gmra.mrb[0].mxu0 %v826
    %v865 = vpop.f32.mrb[0].mxu0
    %v866 = vadd.f32 0.0, %v865
    %v867 = vpop.f32.mrb[0].mxu0
    %v868 = vpop.f32.mrb[0].mxu0
    %v869 = vpop.f32.mrb[0].mxu0
    %870 = vdwg.mxu0
    %v871 = vpack.c.bf16 %v866, %v866
    %v873 = vsel %vm279, %v871, 0
    %v876 = vsel %vm343, %v275, 0
    %878 = vmatprep.subr.bf16.mxu0 0
    %879 = vmatpush1.bf16.msra.mxu0 %v876
    %880 = vmatprep.subr.bf16.mxu0 0
    %881 = vmatpush1.bf16.msra.mxu0 0
    %882 = vmatprep.subr.bf16.mxu0 0
    %883 = vmatpush1.bf16.msra.mxu0 0
    %884 = vmatprep.subr.bf16.mxu0 0
    %885 = vmatpush1.bf16.msra.mxu0 0
    %886 = vmatprep.subr.bf16.mxu0 0
    %887 = vmatpush1.bf16.msra.mxu0 0
    %888 = vmatprep.subr.bf16.mxu0 0
    %889 = vmatpush1.bf16.msra.mxu0 0
    %890 = vmatprep.subr.bf16.mxu0 0
    %891 = vmatpush1.bf16.msra.mxu0 0
    %892 = vmatprep.subr.bf16.mxu0 0
    %893 = vmatpush1.bf16.msra.mxu0 0
    %894 = vmatprep.subr.bf16.mxu0 0
    %895 = vmatpush1.bf16.msra.mxu0 0
    %896 = vmatprep.subr.bf16.mxu0 0
    %897 = vmatpush1.bf16.msra.mxu0 0
    %898 = vmatprep.subr.bf16.mxu0 0
    %899 = vmatpush1.bf16.msra.mxu0 0
    %900 = vmatprep.subr.bf16.mxu0 0
    %901 = vmatpush1.bf16.msra.mxu0 0
    %902 = vmatprep.subr.bf16.mxu0 0
    %903 = vmatpush1.bf16.msra.mxu0 0
    %904 = vmatprep.subr.bf16.mxu0 0
    %905 = vmatpush1.bf16.msra.mxu0 0
    %906 = vmatprep.subr.bf16.mxu0 0
    %907 = vmatpush1.bf16.msra.mxu0 0
    %908 = vmatprep.subr.bf16.mxu0 0
    %909 = vmatpush1.bf16.msra.mxu0 0
    %910 = vmatprep.mubr.bf16.mxu0 0
    %911 = vmatmul.mubr.bf16.gmra.mrb[0].mxu0 %v873
    %v912 = vpop.f32.mrb[0].mxu0
    %v913 = vadd.f32 0.0, %v912
    %v914 = vpop.f32.mrb[0].mxu0
    %v915 = vpop.f32.mrb[0].mxu0
    %v916 = vpop.f32.mrb[0].mxu0
    %917 = vdwg.mxu0
    %v918 = vadd.f32 %v757, %v913
    %v920 = vlaneseq
    %v921 = vshrl.u32 %v920, 7
    %v922 = vsub.s32 0, %v921
    %v923 = vrot.slane %v276, %v922
    %v925 = vadd.f32 %v918, %v923
    %926 = vst.msk [vmem:[#allocation2] sm:$0xff] %vm76, %v925
    %s927 = scalar_lea.vmem %s11, 8
    %v928 = vld [vmem:[%s927] sm:$0xff]
    %vm929 = vcmp.gt.s32.totalorder %v928, 0
    %v930 = vrot.slane %v269, 4
    %v931 = vrot.slane %v270, 4
    %v933 = vsel %vm279, %v930, 0
    %v936 = vsel %vm279, %v931, 0
    %938 = vmatprep.subr.bf16.mxu0 0
    %939 = vmatpush1.bf16.xpose.msra.mxu0 %v936
    %940 = vmatprep.subr.bf16.mxu0 0
    %941 = vmatpush1.bf16.xpose.msra.mxu0 0
    %942 = vmatprep.subr.bf16.mxu0 0
    %943 = vmatpush1.bf16.xpose.msra.mxu0 0
    %944 = vmatprep.subr.bf16.mxu0 0
    %945 = vmatpush1.bf16.xpose.msra.mxu0 0
    %946 = vmatprep.subr.bf16.mxu0 0
    %947 = vmatpush1.bf16.xpose.msra.mxu0 0
    %948 = vmatprep.subr.bf16.mxu0 0
    %949 = vmatpush1.bf16.xpose.msra.mxu0 0
    %950 = vmatprep.subr.bf16.mxu0 0
    %951 = vmatpush1.bf16.xpose.msra.mxu0 0
    %952 = vmatprep.subr.bf16.mxu0 0
    %953 = vmatpush1.bf16.xpose.msra.mxu0 0
    %954 = vmatprep.subr.bf16.mxu0 0
    %955 = vmatpush1.bf16.xpose.msra.mxu0 0
    %956 = vmatprep.subr.bf16.mxu0 0
    %957 = vmatpush1.bf16.xpose.msra.mxu0 0
    %958 = vmatprep.subr.bf16.mxu0 0
    %959 = vmatpush1.bf16.xpose.msra.mxu0 0
    %960 = vmatprep.subr.bf16.mxu0 0
    %961 = vmatpush1.bf16.xpose.msra.mxu0 0
    %962 = vmatprep.subr.bf16.mxu0 0
    %963 = vmatpush1.bf16.xpose.msra.mxu0 0
    %964 = vmatprep.subr.bf16.mxu0 0
    %965 = vmatpush1.bf16.xpose.msra.mxu0 0
    %966 = vmatprep.subr.bf16.mxu0 0
    %967 = vmatpush1.bf16.xpose.msra.mxu0 0
    %968 = vmatprep.subr.bf16.mxu0 0
    %969 = vmatpush1.bf16.xpose.msra.mxu0 0
    %970 = vmatprep.mubr.bf16.mxu0 0
    %971 = vmatmul.mubr.bf16.gmra.mrb[0].mxu0 %v933
    %v972 = vpop.f32.mrb[0].mxu0
    %v973 = vadd.f32 0.0, %v972
    %v974 = vpop.f32.mrb[0].mxu0
    %v975 = vpop.f32.mrb[0].mxu0
    %v976 = vpop.f32.mrb[0].mxu0
    %977 = vdwg.mxu0
    %v978 = vsel %vm929, -1e+10, %v973
    %v979 = vsel %vm279, %v978, -inf
    %980 = vmax.xlane.f32.xlu0 %v979
    %v981 = vpop.xlane.xlu0 %980
    %v982 = vsub.f32 %v978, %v981
    %v983 = vmul.f32 %v982, 1.442695
    %v984 = vpow.pop %v983
    %v985 = vsel %vm279, %v984, 0.0
    %986 = vadd.xlane.f32.xlu0 %v985
    %v987 = vpop.xlane.xlu0 %986
    %v988 = vrcp.pop %v987
    %v989 = vmul.f32 %v984, %v988
    %s990 = scalar_lea.vmem [#allocation4], 32
    %991 = vst.msk [vmem:[%s990] sm:$0xff] %vm279, %v989
    %v992 = vpack.c.bf16 %v989, %v989
    %v993 = vrot.slane %v271, 4
    %v995 = vsel %vm279, %v992, 0
    %v998 = vsel %vm343, %v993, 0
    %1000 = vmatprep.subr.bf16.mxu0 0
    %1001 = vmatpush1.bf16.msra.mxu0 %v998
    %1002 = vmatprep.subr.bf16.mxu0 0
    %1003 = vmatpush1.bf16.msra.mxu0 0
    %1004 = vmatprep.subr.bf16.mxu0 0
    %1005 = vmatpush1.bf16.msra.mxu0 0
    %1006 = vmatprep.subr.bf16.mxu0 0
    %1007 = vmatpush1.bf16.msra.mxu0 0
    %1008 = vmatprep.subr.bf16.mxu0 0
    %1009 = vmatpush1.bf16.msra.mxu0 0
    %1010 = vmatprep.subr.bf16.mxu0 0
    %1011 = vmatpush1.bf16.msra.mxu0 0
    %1012 = vmatprep.subr.bf16.mxu0 0
    %1013 = vmatpush1.bf16.msra.mxu0 0
    %1014 = vmatprep.subr.bf16.mxu0 0
    %1015 = vmatpush1.bf16.msra.mxu0 0
    %1016 = vmatprep.subr.bf16.mxu0 0
    %1017 = vmatpush1.bf16.msra.mxu0 0
    %1018 = vmatprep.subr.bf16.mxu0 0
    %1019 = vmatpush1.bf16.msra.mxu0 0
    %1020 = vmatprep.subr.bf16.mxu0 0
    %1021 = vmatpush1.bf16.msra.mxu0 0
    %1022 = vmatprep.subr.bf16.mxu0 0
    %1023 = vmatpush1.bf16.msra.mxu0 0
    %1024 = vmatprep.subr.bf16.mxu0 0
    %1025 = vmatpush1.bf16.msra.mxu0 0
    %1026 = vmatprep.subr.bf16.mxu0 0
    %1027 = vmatpush1.bf16.msra.mxu0 0
    %1028 = vmatprep.subr.bf16.mxu0 0
    %1029 = vmatpush1.bf16.msra.mxu0 0
    %1030 = vmatprep.subr.bf16.mxu0 0
    %1031 = vmatpush1.bf16.msra.mxu0 0
    %1032 = vmatprep.mubr.bf16.mxu0 0
    %1033 = vmatmul.mubr.bf16.gmra.mrb[0].mxu0 %v995
    %v1034 = vpop.f32.mrb[0].mxu0
    %v1035 = vadd.f32 0.0, %v1034
    %v1036 = vpop.f32.mrb[0].mxu0
    %v1037 = vpop.f32.mrb[0].mxu0
    %v1038 = vpop.f32.mrb[0].mxu0
    %1039 = vdwg.mxu0
    %v1040 = vpack.c.bf16 %v1035, %v1035
    %1041 = vrot.lane.b32.xlu0 %v930, 120
    %v1042 = vpop.permute.xlu0 %1041
    %1043 = vrot.lane.b32.xlu0 %v931, 120
    %v1044 = vpop.permute.xlu0 %1043
    %v1046 = vsel %vm279, %v1042, 0
    %v1049 = vsel %vm279, %v1044, 0
    %1051 = vmatprep.subr.bf16.mxu0 0
    %1052 = vmatpush1.bf16.xpose.msra.mxu0 %v1049
    %1053 = vmatprep.subr.bf16.mxu0 0
    %1054 = vmatpush1.bf16.xpose.msra.mxu0 0
    %1055 = vmatprep.subr.bf16.mxu0 0
    %1056 = vmatpush1.bf16.xpose.msra.mxu0 0
    %1057 = vmatprep.subr.bf16.mxu0 0
    %1058 = vmatpush1.bf16.xpose.msra.mxu0 0
    %1059 = vmatprep.subr.bf16.mxu0 0
    %1060 = vmatpush1.bf16.xpose.msra.mxu0 0
    %1061 = vmatprep.subr.bf16.mxu0 0
    %1062 = vmatpush1.bf16.xpose.msra.mxu0 0
    %1063 = vmatprep.subr.bf16.mxu0 0
    %1064 = vmatpush1.bf16.xpose.msra.mxu0 0
    %1065 = vmatprep.subr.bf16.mxu0 0
    %1066 = vmatpush1.bf16.xpose.msra.mxu0 0
    %1067 = vmatprep.subr.bf16.mxu0 0
    %1068 = vmatpush1.bf16.xpose.msra.mxu0 0
    %1069 = vmatprep.subr.bf16.mxu0 0
    %1070 = vmatpush1.bf16.xpose.msra.mxu0 0
    %1071 = vmatprep.subr.bf16.mxu0 0
    %1072 = vmatpush1.bf16.xpose.msra.mxu0 0
    %1073 = vmatprep.subr.bf16.mxu0 0
    %1074 = vmatpush1.bf16.xpose.msra.mxu0 0
    %1075 = vmatprep.subr.bf16.mxu0 0
    %1076 = vmatpush1.bf16.xpose.msra.mxu0 0
    %1077 = vmatprep.subr.bf16.mxu0 0
    %1078 = vmatpush1.bf16.xpose.msra.mxu0 0
    %1079 = vmatprep.subr.bf16.mxu0 0
    %1080 = vmatpush1.bf16.xpose.msra.mxu0 0
    %1081 = vmatprep.subr.bf16.mxu0 0
    %1082 = vmatpush1.bf16.xpose.msra.mxu0 0
    %1083 = vmatprep.mubr.bf16.mxu0 0
    %1084 = vmatmul.mubr.bf16.gmra.mrb[0].mxu0 %v1046
    %v1085 = vpop.f32.mrb[0].mxu0
    %v1086 = vadd.f32 0.0, %v1085
    %v1087 = vpop.f32.mrb[0].mxu0
    %v1088 = vpop.f32.mrb[0].mxu0
    %v1089 = vpop.f32.mrb[0].mxu0
    %1090 = vdwg.mxu0
    %v1091 = vsel %vm929, -1e+10, %v1086
    %v1092 = vsel %vm279, %v1091, -inf
    %1093 = vmax.xlane.f32.xlu0 %v1092
    %v1094 = vpop.xlane.xlu0 %1093
    %v1095 = vsub.f32 %v1091, %v1094
    %v1096 = vmul.f32 %v1095, 1.442695
    %v1097 = vpow.pop %v1096
    %v1098 = vsel %vm279, %v1097, 0.0
    %1099 = vadd.xlane.f32.xlu0 %v1098
    %v1100 = vpop.xlane.xlu0 %1099
    %v1101 = vrcp.pop %v1100
    %v1102 = vmul.f32 %v1097, %v1101
    %s1103 = scalar_lea.vmem [#allocation4], 40
    %1104 = vst.msk [vmem:[%s1103] sm:$0xff] %vm279, %v1102
    %v1105 = vpack.c.bf16 %v1102, %v1102
    %1106 = vrot.lane.b32.xlu0 %v993, 120
    %v1107 = vpop.permute.xlu0 %1106
    %v1109 = vsel %vm279, %v1105, 0
    %v1112 = vsel %vm343, %v1107, 0
    %1114 = vmatprep.subr.bf16.mxu0 0
    %1115 = vmatpush1.bf16.msra.mxu0 %v1112
    %1116 = vmatprep.subr.bf16.mxu0 0
    %1117 = vmatpush1.bf16.msra.mxu0 0
    %1118 = vmatprep.subr.bf16.mxu0 0
    %1119 = vmatpush1.bf16.msra.mxu0 0
    %1120 = vmatprep.subr.bf16.mxu0 0
    %1121 = vmatpush1.bf16.msra.mxu0 0
    %1122 = vmatprep.subr.bf16.mxu0 0
    %1123 = vmatpush1.bf16.msra.mxu0 0
    %1124 = vmatprep.subr.bf16.mxu0 0
    %1125 = vmatpush1.bf16.msra.mxu0 0
    %1126 = vmatprep.subr.bf16.mxu0 0
    %1127 = vmatpush1.bf16.msra.mxu0 0
    %1128 = vmatprep.subr.bf16.mxu0 0
    %1129 = vmatpush1.bf16.msra.mxu0 0
    %1130 = vmatprep.subr.bf16.mxu0 0
    %1131 = vmatpush1.bf16.msra.mxu0 0
    %1132 = vmatprep.subr.bf16.mxu0 0
    %1133 = vmatpush1.bf16.msra.mxu0 0
    %1134 = vmatprep.subr.bf16.mxu0 0
    %1135 = vmatpush1.bf16.msra.mxu0 0
    %1136 = vmatprep.subr.bf16.mxu0 0
    %1137 = vmatpush1.bf16.msra.mxu0 0
    %1138 = vmatprep.subr.bf16.mxu0 0
    %1139 = vmatpush1.bf16.msra.mxu0 0
    %1140 = vmatprep.subr.bf16.mxu0 0
    %1141 = vmatpush1.bf16.msra.mxu0 0
    %1142 = vmatprep.subr.bf16.mxu0 0
    %1143 = vmatpush1.bf16.msra.mxu0 0
    %1144 = vmatprep.subr.bf16.mxu0 0
    %1145 = vmatpush1.bf16.msra.mxu0 0
    %1146 = vmatprep.mubr.bf16.mxu0 0
    %1147 = vmatmul.mubr.bf16.gmra.mrb[0].mxu0 %v1109
    %v1148 = vpop.f32.mrb[0].mxu0
    %v1149 = vadd.f32 0.0, %v1148
    %v1150 = vpop.f32.mrb[0].mxu0
    %v1151 = vpop.f32.mrb[0].mxu0
    %v1152 = vpop.f32.mrb[0].mxu0
    %1153 = vdwg.mxu0
    %v1154 = vpack.c.bf16 %v1149, %v1149
    %v1156 = vsel %vm279, %v1154, 0
    %1158 = vmatprep.subr.bf16.mxu0 0
    %1159 = vmatpush1.bf16.msra.mxu0 %v509
    %1160 = vmatprep.subr.bf16.mxu0 0
    %1161 = vmatpush1.bf16.msra.mxu0 0
    %1162 = vmatprep.subr.bf16.mxu0 0
    %1163 = vmatpush1.bf16.msra.mxu0 0
    %1164 = vmatprep.subr.bf16.mxu0 0
    %1165 = vmatpush1.bf16.msra.mxu0 0
    %1166 = vmatprep.subr.bf16.mxu0 0
    %1167 = vmatpush1.bf16.msra.mxu0 0
    %1168 = vmatprep.subr.bf16.mxu0 0
    %1169 = vmatpush1.bf16.msra.mxu0 0
    %1170 = vmatprep.subr.bf16.mxu0 0
    %1171 = vmatpush1.bf16.msra.mxu0 0
    %1172 = vmatprep.subr.bf16.mxu0 0
    %1173 = vmatpush1.bf16.msra.mxu0 0
    %1174 = vmatprep.subr.bf16.mxu0 0
    %1175 = vmatpush1.bf16.msra.mxu0 0
    %1176 = vmatprep.subr.bf16.mxu0 0
    %1177 = vmatpush1.bf16.msra.mxu0 0
    %1178 = vmatprep.subr.bf16.mxu0 0
    %1179 = vmatpush1.bf16.msra.mxu0 0
    %1180 = vmatprep.subr.bf16.mxu0 0
    %1181 = vmatpush1.bf16.msra.mxu0 0
    %1182 = vmatprep.subr.bf16.mxu0 0
    %1183 = vmatpush1.bf16.msra.mxu0 0
    %1184 = vmatprep.subr.bf16.mxu0 0
    %1185 = vmatpush1.bf16.msra.mxu0 0
    %1186 = vmatprep.subr.bf16.mxu0 0
    %1187 = vmatpush1.bf16.msra.mxu0 0
    %1188 = vmatprep.subr.bf16.mxu0 0
    %1189 = vmatpush1.bf16.msra.mxu0 0
    %1190 = vmatprep.mubr.bf16.mxu0 0
    %1191 = vmatmul.mubr.bf16.gmra.mrb[0].mxu0 %v1156
    %v1192 = vpop.f32.mrb[0].mxu0
    %v1193 = vadd.f32 0.0, %v1192
    %v1194 = vpop.f32.mrb[0].mxu0
    %v1195 = vpop.f32.mrb[0].mxu0
    %v1196 = vpop.f32.mrb[0].mxu0
    %1197 = vdwg.mxu0
    %v1199 = vsel %vm279, %v1040, 0
    %1201 = vmatprep.subr.bf16.mxu0 0
    %1202 = vmatpush1.bf16.msra.mxu0 %v555
    %1203 = vmatprep.subr.bf16.mxu0 0
    %1204 = vmatpush1.bf16.msra.mxu0 0
    %1205 = vmatprep.subr.bf16.mxu0 0
    %1206 = vmatpush1.bf16.msra.mxu0 0
    %1207 = vmatprep.subr.bf16.mxu0 0
    %1208 = vmatpush1.bf16.msra.mxu0 0
    %1209 = vmatprep.subr.bf16.mxu0 0
    %1210 = vmatpush1.bf16.msra.mxu0 0
    %1211 = vmatprep.subr.bf16.mxu0 0
    %1212 = vmatpush1.bf16.msra.mxu0 0
    %1213 = vmatprep.subr.bf16.mxu0 0
    %1214 = vmatpush1.bf16.msra.mxu0 0
    %1215 = vmatprep.subr.bf16.mxu0 0
    %1216 = vmatpush1.bf16.msra.mxu0 0
    %1217 = vmatprep.subr.bf16.mxu0 0
    %1218 = vmatpush1.bf16.msra.mxu0 0
    %1219 = vmatprep.subr.bf16.mxu0 0
    %1220 = vmatpush1.bf16.msra.mxu0 0
    %1221 = vmatprep.subr.bf16.mxu0 0
    %1222 = vmatpush1.bf16.msra.mxu0 0
    %1223 = vmatprep.subr.bf16.mxu0 0
    %1224 = vmatpush1.bf16.msra.mxu0 0
    %1225 = vmatprep.subr.bf16.mxu0 0
    %1226 = vmatpush1.bf16.msra.mxu0 0
    %1227 = vmatprep.subr.bf16.mxu0 0
    %1228 = vmatpush1.bf16.msra.mxu0 0
    %1229 = vmatprep.subr.bf16.mxu0 0
    %1230 = vmatpush1.bf16.msra.mxu0 0
    %1231 = vmatprep.subr.bf16.mxu0 0
    %1232 = vmatpush1.bf16.msra.mxu0 0
    %1233 = vmatprep.mubr.bf16.mxu0 0
    %1234 = vmatmul.mubr.bf16.gmra.mrb[0].mxu0 %v1199
    %v1235 = vpop.f32.mrb[0].mxu0
    %v1236 = vadd.f32 %v1193, %v1235
    %v1237 = vpop.f32.mrb[0].mxu0
    %v1238 = vpop.f32.mrb[0].mxu0
    %v1239 = vpop.f32.mrb[0].mxu0
    %1240 = vdwg.mxu0
    %1241 = vrot.lane.b32.xlu0 %v930, 112
    %v1242 = vpop.permute.xlu0 %1241
    %1243 = vrot.lane.b32.xlu0 %v931, 112
    %v1244 = vpop.permute.xlu0 %1243
    %v1246 = vsel %vm279, %v1242, 0
    %v1249 = vsel %vm279, %v1244, 0
    %1251 = vmatprep.subr.bf16.mxu0 0
    %1252 = vmatpush1.bf16.xpose.msra.mxu0 %v1249
    %1253 = vmatprep.subr.bf16.mxu0 0
    %1254 = vmatpush1.bf16.xpose.msra.mxu0 0
    %1255 = vmatprep.subr.bf16.mxu0 0
    %1256 = vmatpush1.bf16.xpose.msra.mxu0 0
    %1257 = vmatprep.subr.bf16.mxu0 0
    %1258 = vmatpush1.bf16.xpose.msra.mxu0 0
    %1259 = vmatprep.subr.bf16.mxu0 0
    %1260 = vmatpush1.bf16.xpose.msra.mxu0 0
    %1261 = vmatprep.subr.bf16.mxu0 0
    %1262 = vmatpush1.bf16.xpose.msra.mxu0 0
    %1263 = vmatprep.subr.bf16.mxu0 0
    %1264 = vmatpush1.bf16.xpose.msra.mxu0 0
    %1265 = vmatprep.subr.bf16.mxu0 0
    %1266 = vmatpush1.bf16.xpose.msra.mxu0 0
    %1267 = vmatprep.subr.bf16.mxu0 0
    %1268 = vmatpush1.bf16.xpose.msra.mxu0 0
    %1269 = vmatprep.subr.bf16.mxu0 0
    %1270 = vmatpush1.bf16.xpose.msra.mxu0 0
    %1271 = vmatprep.subr.bf16.mxu0 0
    %1272 = vmatpush1.bf16.xpose.msra.mxu0 0
    %1273 = vmatprep.subr.bf16.mxu0 0
    %1274 = vmatpush1.bf16.xpose.msra.mxu0 0
    %1275 = vmatprep.subr.bf16.mxu0 0
    %1276 = vmatpush1.bf16.xpose.msra.mxu0 0
    %1277 = vmatprep.subr.bf16.mxu0 0
    %1278 = vmatpush1.bf16.xpose.msra.mxu0 0
    %1279 = vmatprep.subr.bf16.mxu0 0
    %1280 = vmatpush1.bf16.xpose.msra.mxu0 0
    %1281 = vmatprep.subr.bf16.mxu0 0
    %1282 = vmatpush1.bf16.xpose.msra.mxu0 0
    %1283 = vmatprep.mubr.bf16.mxu0 0
    %1284 = vmatmul.mubr.bf16.gmra.mrb[0].mxu0 %v1246
    %v1285 = vpop.f32.mrb[0].mxu0
    %v1286 = vadd.f32 0.0, %v1285
    %v1287 = vpop.f32.mrb[0].mxu0
    %v1288 = vpop.f32.mrb[0].mxu0
    %v1289 = vpop.f32.mrb[0].mxu0
    %1290 = vdwg.mxu0
    %v1291 = vsel %vm929, -1e+10, %v1286
    %v1292 = vsel %vm279, %v1291, -inf
    %1293 = vmax.xlane.f32.xlu0 %v1292
    %v1294 = vpop.xlane.xlu0 %1293
    %v1295 = vsub.f32 %v1291, %v1294
    %v1296 = vmul.f32 %v1295, 1.442695
    %v1297 = vpow.pop %v1296
    %v1298 = vsel %vm279, %v1297, 0.0
    %1299 = vadd.xlane.f32.xlu0 %v1298
    %v1300 = vpop.xlane.xlu0 %1299
    %v1301 = vrcp.pop %v1300
    %v1302 = vmul.f32 %v1297, %v1301
    %s1303 = scalar_lea.vmem [#allocation4], 48
    %1304 = vst.msk [vmem:[%s1303] sm:$0xff] %vm279, %v1302
    %v1305 = vpack.c.bf16 %v1302, %v1302
    %1306 = vrot.lane.b32.xlu0 %v993, 112
    %v1307 = vpop.permute.xlu0 %1306
    %v1309 = vsel %vm279, %v1305, 0
    %v1312 = vsel %vm343, %v1307, 0
    %1314 = vmatprep.subr.bf16.mxu0 0
    %1315 = vmatpush1.bf16.msra.mxu0 %v1312
    %1316 = vmatprep.subr.bf16.mxu0 0
    %1317 = vmatpush1.bf16.msra.mxu0 0
    %1318 = vmatprep.subr.bf16.mxu0 0
    %1319 = vmatpush1.bf16.msra.mxu0 0
    %1320 = vmatprep.subr.bf16.mxu0 0
    %1321 = vmatpush1.bf16.msra.mxu0 0
    %1322 = vmatprep.subr.bf16.mxu0 0
    %1323 = vmatpush1.bf16.msra.mxu0 0
    %1324 = vmatprep.subr.bf16.mxu0 0
    %1325 = vmatpush1.bf16.msra.mxu0 0
    %1326 = vmatprep.subr.bf16.mxu0 0
    %1327 = vmatpush1.bf16.msra.mxu0 0
    %1328 = vmatprep.subr.bf16.mxu0 0
    %1329 = vmatpush1.bf16.msra.mxu0 0
    %1330 = vmatprep.subr.bf16.mxu0 0
    %1331 = vmatpush1.bf16.msra.mxu0 0
    %1332 = vmatprep.subr.bf16.mxu0 0
    %1333 = vmatpush1.bf16.msra.mxu0 0
    %1334 = vmatprep.subr.bf16.mxu0 0
    %1335 = vmatpush1.bf16.msra.mxu0 0
    %1336 = vmatprep.subr.bf16.mxu0 0
    %1337 = vmatpush1.bf16.msra.mxu0 0
    %1338 = vmatprep.subr.bf16.mxu0 0
    %1339 = vmatpush1.bf16.msra.mxu0 0
    %1340 = vmatprep.subr.bf16.mxu0 0
    %1341 = vmatpush1.bf16.msra.mxu0 0
    %1342 = vmatprep.subr.bf16.mxu0 0
    %1343 = vmatpush1.bf16.msra.mxu0 0
    %1344 = vmatprep.subr.bf16.mxu0 0
    %1345 = vmatpush1.bf16.msra.mxu0 0
    %1346 = vmatprep.mubr.bf16.mxu0 0
    %1347 = vmatmul.mubr.bf16.gmra.mrb[0].mxu0 %v1309
    %v1348 = vpop.f32.mrb[0].mxu0
    %v1349 = vadd.f32 0.0, %v1348
    %v1350 = vpop.f32.mrb[0].mxu0
    %v1351 = vpop.f32.mrb[0].mxu0
    %v1352 = vpop.f32.mrb[0].mxu0
    %1353 = vdwg.mxu0
    %v1354 = vpack.c.bf16 %v1349, %v1349
    %v1356 = vsel %vm279, %v1354, 0
    %1358 = vmatprep.subr.bf16.mxu0 0
    %1359 = vmatpush1.bf16.msra.mxu0 %v715
    %1360 = vmatprep.subr.bf16.mxu0 0
    %1361 = vmatpush1.bf16.msra.mxu0 0
    %1362 = vmatprep.subr.bf16.mxu0 0
    %1363 = vmatpush1.bf16.msra.mxu0 0
    %1364 = vmatprep.subr.bf16.mxu0 0
    %1365 = vmatpush1.bf16.msra.mxu0 0
    %1366 = vmatprep.subr.bf16.mxu0 0
    %1367 = vmatpush1.bf16.msra.mxu0 0
    %1368 = vmatprep.subr.bf16.mxu0 0
    %1369 = vmatpush1.bf16.msra.mxu0 0
    %1370 = vmatprep.subr.bf16.mxu0 0
    %1371 = vmatpush1.bf16.msra.mxu0 0
    %1372 = vmatprep.subr.bf16.mxu0 0
    %1373 = vmatpush1.bf16.msra.mxu0 0
    %1374 = vmatprep.subr.bf16.mxu0 0
    %1375 = vmatpush1.bf16.msra.mxu0 0
    %1376 = vmatprep.subr.bf16.mxu0 0
    %1377 = vmatpush1.bf16.msra.mxu0 0
    %1378 = vmatprep.subr.bf16.mxu0 0
    %1379 = vmatpush1.bf16.msra.mxu0 0
    %1380 = vmatprep.subr.bf16.mxu0 0
    %1381 = vmatpush1.bf16.msra.mxu0 0
    %1382 = vmatprep.subr.bf16.mxu0 0
    %1383 = vmatpush1.bf16.msra.mxu0 0
    %1384 = vmatprep.subr.bf16.mxu0 0
    %1385 = vmatpush1.bf16.msra.mxu0 0
    %1386 = vmatprep.subr.bf16.mxu0 0
    %1387 = vmatpush1.bf16.msra.mxu0 0
    %1388 = vmatprep.subr.bf16.mxu0 0
    %1389 = vmatpush1.bf16.msra.mxu0 0
    %1390 = vmatprep.mubr.bf16.mxu0 0
    %1391 = vmatmul.mubr.bf16.gmra.mrb[0].mxu0 %v1356
    %v1392 = vpop.f32.mrb[0].mxu0
    %v1393 = vadd.f32 0.0, %v1392
    %v1394 = vpop.f32.mrb[0].mxu0
    %v1395 = vpop.f32.mrb[0].mxu0
    %v1396 = vpop.f32.mrb[0].mxu0
    %1397 = vdwg.mxu0
    %v1398 = vadd.f32 %v1236, %v1393
    %1399 = vrot.lane.b32.xlu0 %v930, 104
    %v1400 = vpop.permute.xlu0 %1399
    %1401 = vrot.lane.b32.xlu0 %v931, 104
    %v1402 = vpop.permute.xlu0 %1401
    %v1404 = vsel %vm279, %v1400, 0
    %v1407 = vsel %vm279, %v1402, 0
    %1409 = vmatprep.subr.bf16.mxu0 0
    %1410 = vmatpush1.bf16.xpose.msra.mxu0 %v1407
    %1411 = vmatprep.subr.bf16.mxu0 0
    %1412 = vmatpush1.bf16.xpose.msra.mxu0 0
    %1413 = vmatprep.subr.bf16.mxu0 0
    %1414 = vmatpush1.bf16.xpose.msra.mxu0 0
    %1415 = vmatprep.subr.bf16.mxu0 0
    %1416 = vmatpush1.bf16.xpose.msra.mxu0 0
    %1417 = vmatprep.subr.bf16.mxu0 0
    %1418 = vmatpush1.bf16.xpose.msra.mxu0 0
    %1419 = vmatprep.subr.bf16.mxu0 0
    %1420 = vmatpush1.bf16.xpose.msra.mxu0 0
    %1421 = vmatprep.subr.bf16.mxu0 0
    %1422 = vmatpush1.bf16.xpose.msra.mxu0 0
    %1423 = vmatprep.subr.bf16.mxu0 0
    %1424 = vmatpush1.bf16.xpose.msra.mxu0 0
    %1425 = vmatprep.subr.bf16.mxu0 0
    %1426 = vmatpush1.bf16.xpose.msra.mxu0 0
    %1427 = vmatprep.subr.bf16.mxu0 0
    %1428 = vmatpush1.bf16.xpose.msra.mxu0 0
    %1429 = vmatprep.subr.bf16.mxu0 0
    %1430 = vmatpush1.bf16.xpose.msra.mxu0 0
    %1431 = vmatprep.subr.bf16.mxu0 0
    %1432 = vmatpush1.bf16.xpose.msra.mxu0 0
    %1433 = vmatprep.subr.bf16.mxu0 0
    %1434 = vmatpush1.bf16.xpose.msra.mxu0 0
    %1435 = vmatprep.subr.bf16.mxu0 0
    %1436 = vmatpush1.bf16.xpose.msra.mxu0 0
    %1437 = vmatprep.subr.bf16.mxu0 0
    %1438 = vmatpush1.bf16.xpose.msra.mxu0 0
    %1439 = vmatprep.subr.bf16.mxu0 0
    %1440 = vmatpush1.bf16.xpose.msra.mxu0 0
    %1441 = vmatprep.mubr.bf16.mxu0 0
    %1442 = vmatmul.mubr.bf16.gmra.mrb[0].mxu0 %v1404
    %v1443 = vpop.f32.mrb[0].mxu0
    %v1444 = vadd.f32 0.0, %v1443
    %v1445 = vpop.f32.mrb[0].mxu0
    %v1446 = vpop.f32.mrb[0].mxu0
    %v1447 = vpop.f32.mrb[0].mxu0
    %1448 = vdwg.mxu0
    %v1449 = vsel %vm929, -1e+10, %v1444
    %v1450 = vsel %vm279, %v1449, -inf
    %1451 = vmax.xlane.f32.xlu0 %v1450
    %v1452 = vpop.xlane.xlu0 %1451
    %v1453 = vsub.f32 %v1449, %v1452
    %v1454 = vmul.f32 %v1453, 1.442695
    %v1455 = vpow.pop %v1454
    %v1456 = vsel %vm279, %v1455, 0.0
    %1457 = vadd.xlane.f32.xlu0 %v1456
    %v1458 = vpop.xlane.xlu0 %1457
    %v1459 = vrcp.pop %v1458
    %v1460 = vmul.f32 %v1455, %v1459
    %s1461 = scalar_lea.vmem [#allocation4], 56
    %1462 = vst.msk [vmem:[%s1461] sm:$0xff] %vm279, %v1460
    %v1463 = vpack.c.bf16 %v1460, %v1460
    %1464 = vrot.lane.b32.xlu0 %v993, 104
    %v1465 = vpop.permute.xlu0 %1464
    %v1467 = vsel %vm279, %v1463, 0
    %v1470 = vsel %vm343, %v1465, 0
    %1472 = vmatprep.subr.bf16.mxu0 0
    %1473 = vmatpush1.bf16.msra.mxu0 %v1470
    %1474 = vmatprep.subr.bf16.mxu0 0
    %1475 = vmatpush1.bf16.msra.mxu0 0
    %1476 = vmatprep.subr.bf16.mxu0 0
    %1477 = vmatpush1.bf16.msra.mxu0 0
    %1478 = vmatprep.subr.bf16.mxu0 0
    %1479 = vmatpush1.bf16.msra.mxu0 0
    %1480 = vmatprep.subr.bf16.mxu0 0
    %1481 = vmatpush1.bf16.msra.mxu0 0
    %1482 = vmatprep.subr.bf16.mxu0 0
    %1483 = vmatpush1.bf16.msra.mxu0 0
    %1484 = vmatprep.subr.bf16.mxu0 0
    %1485 = vmatpush1.bf16.msra.mxu0 0
    %1486 = vmatprep.subr.bf16.mxu0 0
    %1487 = vmatpush1.bf16.msra.mxu0 0
    %1488 = vmatprep.subr.bf16.mxu0 0
    %1489 = vmatpush1.bf16.msra.mxu0 0
    %1490 = vmatprep.subr.bf16.mxu0 0
    %1491 = vmatpush1.bf16.msra.mxu0 0
    %1492 = vmatprep.subr.bf16.mxu0 0
    %1493 = vmatpush1.bf16.msra.mxu0 0
    %1494 = vmatprep.subr.bf16.mxu0 0
    %1495 = vmatpush1.bf16.msra.mxu0 0
    %1496 = vmatprep.subr.bf16.mxu0 0
    %1497 = vmatpush1.bf16.msra.mxu0 0
    %1498 = vmatprep.subr.bf16.mxu0 0
    %1499 = vmatpush1.bf16.msra.mxu0 0
    %1500 = vmatprep.subr.bf16.mxu0 0
    %1501 = vmatpush1.bf16.msra.mxu0 0
    %1502 = vmatprep.subr.bf16.mxu0 0
    %1503 = vmatpush1.bf16.msra.mxu0 0
    %1504 = vmatprep.mubr.bf16.mxu0 0
    %1505 = vmatmul.mubr.bf16.gmra.mrb[0].mxu0 %v1467
    %v1506 = vpop.f32.mrb[0].mxu0
    %v1507 = vadd.f32 0.0, %v1506
    %v1508 = vpop.f32.mrb[0].mxu0
    %v1509 = vpop.f32.mrb[0].mxu0
    %v1510 = vpop.f32.mrb[0].mxu0
    %1511 = vdwg.mxu0
    %v1512 = vpack.c.bf16 %v1507, %v1507
    %v1514 = vsel %vm279, %v1512, 0
    %1516 = vmatprep.subr.bf16.mxu0 0
    %1517 = vmatpush1.bf16.msra.mxu0 %v876
    %1518 = vmatprep.subr.bf16.mxu0 0
    %1519 = vmatpush1.bf16.msra.mxu0 0
    %1520 = vmatprep.subr.bf16.mxu0 0
    %1521 = vmatpush1.bf16.msra.mxu0 0
    %1522 = vmatprep.subr.bf16.mxu0 0
    %1523 = vmatpush1.bf16.msra.mxu0 0
    %1524 = vmatprep.subr.bf16.mxu0 0
    %1525 = vmatpush1.bf16.msra.mxu0 0
    %1526 = vmatprep.subr.bf16.mxu0 0
    %1527 = vmatpush1.bf16.msra.mxu0 0
    %1528 = vmatprep.subr.bf16.mxu0 0
    %1529 = vmatpush1.bf16.msra.mxu0 0
    %1530 = vmatprep.subr.bf16.mxu0 0
    %1531 = vmatpush1.bf16.msra.mxu0 0
    %1532 = vmatprep.subr.bf16.mxu0 0
    %1533 = vmatpush1.bf16.msra.mxu0 0
    %1534 = vmatprep.subr.bf16.mxu0 0
    %1535 = vmatpush1.bf16.msra.mxu0 0
    %1536 = vmatprep.subr.bf16.mxu0 0
    %1537 = vmatpush1.bf16.msra.mxu0 0
    %1538 = vmatprep.subr.bf16.mxu0 0
    %1539 = vmatpush1.bf16.msra.mxu0 0
    %1540 = vmatprep.subr.bf16.mxu0 0
    %1541 = vmatpush1.bf16.msra.mxu0 0
    %1542 = vmatprep.subr.bf16.mxu0 0
    %1543 = vmatpush1.bf16.msra.mxu0 0
    %1544 = vmatprep.subr.bf16.mxu0 0
    %1545 = vmatpush1.bf16.msra.mxu0 0
    %1546 = vmatprep.subr.bf16.mxu0 0
    %1547 = vmatpush1.bf16.msra.mxu0 0
    %1548 = vmatprep.mubr.bf16.mxu0 0
    %1549 = vmatmul.mubr.bf16.gmra.mrb[0].mxu0 %v1514
    %v1550 = vpop.f32.mrb[0].mxu0
    %v1551 = vadd.f32 0.0, %v1550
    %v1552 = vpop.f32.mrb[0].mxu0
    %v1553 = vpop.f32.mrb[0].mxu0
    %v1554 = vpop.f32.mrb[0].mxu0
    %1555 = vdwg.mxu0
    %v1556 = vadd.f32 %v1398, %v1551
    %v1557 = vadd.f32 %v1556, %v923
    %1558 = vst.msk [vmem:[#allocation2 + $0x8] sm:$0xff] %vm76, %v1557
    // Predicated region
    $region50: #{mha_forward.1} parent=1 // pred_check
      _
    $region51: #{mha_forward.1} parent=1 // pred_check_branch
      %1560 = sbr.rel (0) target = $region53
    $region52: #{mha_forward.1} parent=1 // pred_region
      %s1562 = ssub.s32 256, 256
      %1563 = vsyncadd [#allocation3], %s1562
      %s1564 = sshll.u32 [#allocation2], 4
      %s1565 = int_to_ptr.vmem [resolvable:$true] %s1564
      %1570 = dma.vmem_to_hbm [thread:$0]  %s1565, 256, %s12, [#allocation3], 128, 128, 8
    $region53: #{mha_forward.1} parent=1 // pred_fallthru
      _
    // Predicated region
    $region54: #{mha_forward.1} parent=1 // pred_check
      _
    $region55: #{mha_forward.1} parent=1 // pred_check_branch
      %1572 = sbr.rel (0) target = $region57
    $region56: #{mha_forward.1} parent=1 // pred_region
      %s1574 = ssub.s32 1024, 1024
      %1575 = vsyncadd [#allocation5], %s1574
      %s1576 = sshll.u32 [#allocation4], 4
      %s1577 = int_to_ptr.vmem [resolvable:$true] %s1576
      %1582 = dma.vmem_to_hbm [thread:$0]  %s1577, 1024, %s13, [#allocation5], 128, 128, 8
    $region57: #{mha_forward.1} parent=1 // pred_fallthru
      _
    // Predicated region
    $region58: #{mha_forward.1} parent=1 // pred_check
      _
    $region59: #{mha_forward.1} parent=1 // pred_check_branch
      %1584 = sbr.rel (0) target = $region61
    $region60: #{mha_forward.1} parent=1 // pred_region
      %1585 = dma.done [#allocation3], 256
    $region61: #{mha_forward.1} parent=1 // pred_fallthru
      _
    // Predicated region
    $region62: #{mha_forward.1} parent=1 // pred_check
      _
    $region63: #{mha_forward.1} parent=1 // pred_check_branch
      %1587 = sbr.rel (0) target = $region65
    $region64: #{mha_forward.1} parent=1 // pred_region
      %1588 = dma.done [#allocation5], 1024
    $region65: #{mha_forward.1} parent=1 // pred_fallthru
      _
    %1589 = vsyncpa [#allocation3], 1
    %1590 = vsyncpa [#allocation5], 1

</llo_original>
